<compile_context>
chip_gen: v5e
topology: v5e:2x2
jax: 0.10.0
libtpu: 0.0.40
codegen_flags: <defaults>
</compile_context>

<pallas_src>
import jax
import jax.numpy as jnp
from jax.experimental import pallas as pl
from jax.experimental.pallas import tpu as pltpu

# ---------------- model config (small, consistent with the module) -----------
HIDDEN = 32          # args.hidden_size
NUM_HEADS = 4
HEAD_DIM = HIDDEN // NUM_HEADS
INTERMEDIATE = 64
NUM_LAYERS = 2
VOCAB = 64
MAX_POS = 16
TYPE_VOCAB = 2
LN_EPS = 1e-12

BATCH = 2
SEQ = 8


# ---------------- in-kernel helpers -------------------------------------------
def _layernorm(x, gamma, beta):
    """LayerNorm over last dim; gamma/beta are [1, H] (broadcast)."""
    mu = jnp.mean(x, axis=-1, keepdims=True)
    var = jnp.mean(jnp.square(x - mu), axis=-1, keepdims=True)
    inv = jax.lax.rsqrt(var + LN_EPS)
    return (x - mu) * inv * gamma + beta


# ---------------- fully fused BERT kernel (one grid step == one batch row) -----
def _bert_kernel(ids_ref, seg_ref, mask_ref,
                 wemb_ref, pemb_ref, temb_ref, embln_ref,
                 wqkv_ref, bqkv_ref, wo_ref, bo_ref, ln1_ref,
                 w1_ref, b1_ref, w2_ref, b2_ref, ln2_ref,
                 wspan_ref, bspan_ref, wsent_ref, bsent_ref,
                 span_ref, sent_ref):
    f32 = jnp.float32

    # ---- embeddings: gather via one-hot matmuls (kept entirely in-kernel) ----
    ids = ids_ref[...]                                              # [S, 1] i32
    vocab_iota = jax.lax.broadcasted_iota(jnp.int32, (SEQ, VOCAB), 1)
    word_oh = (ids == vocab_iota).astype(f32)                       # [S, V]
    emb = jnp.dot(word_oh, wemb_ref[...], preferred_element_type=f32)

    row_iota = jax.lax.broadcasted_iota(jnp.int32, (SEQ, MAX_POS), 0)
    pos_iota = jax.lax.broadcasted_iota(jnp.int32, (SEQ, MAX_POS), 1)
    pos_oh = (row_iota == pos_iota).astype(f32)                     # [S, P]
    emb = emb + jnp.dot(pos_oh, pemb_ref[...], preferred_element_type=f32)

    seg = seg_ref[...]                                              # [S, 1] f32
    temb = temb_ref[...]                                            # [2, H]
    emb = emb + (1.0 - seg) * temb[0:1, :] + seg * temb[1:2, :]

    embln = embln_ref[...]
    h = _layernorm(emb, embln[0:1, :], embln[1:2, :])               # [S, H]

    # additive attention-mask bias, broadcast over heads and query rows
    bias3 = ((1.0 - mask_ref[0]) * (-1e9))[None]                    # [1, 1, S]
    scale = 1.0 / float(HEAD_DIM) ** 0.5

    # ---- transformer layers: static in-kernel loop over stacked weights ----
    for l in range(NUM_LAYERS):
        # fused QKV projection (one MXU matmul)
        qkv = (jnp.dot(h, wqkv_ref[l], preferred_element_type=f32)
               + bqkv_ref[l])                                       # [S, 3H]
        q = qkv[:, 0:HIDDEN]
        k = qkv[:, HIDDEN:2 * HIDDEN]
        v = qkv[:, 2 * HIDDEN:3 * HIDDEN]

        # head-batched attention: one score block / softmax / PV per layer
        qn = jnp.stack([q[:, i * HEAD_DIM:(i + 1) * HEAD_DIM]
                        for i in range(NUM_HEADS)], axis=0)         # [NH, S, D]
        kn = jnp.stack([k[:, i * HEAD_DIM:(i + 1) * HEAD_DIM]
                        for i in range(NUM_HEADS)], axis=0)
        vn = jnp.stack([v[:, i * HEAD_DIM:(i + 1) * HEAD_DIM]
                        for i in range(NUM_HEADS)], axis=0)

        s = jnp.einsum('nqd,nkd->nqk', qn, kn,
                       preferred_element_type=f32) * scale + bias3  # [NH, S, S]
        m = jnp.max(s, axis=-1, keepdims=True)
        p = jnp.exp(s - m)
        p = p * pl.reciprocal(jnp.sum(p, axis=-1, keepdims=True), approx=True)
        ctxn = jnp.einsum('nqk,nkd->nqd', p, vn,
                          preferred_element_type=f32)               # [NH, S, D]
        ctx = jnp.concatenate([ctxn[i] for i in range(NUM_HEADS)],
                              axis=-1)                              # [S, H]

        # attention output projection + residual + LayerNorm
        attn = jnp.dot(ctx, wo_ref[l], preferred_element_type=f32) + bo_ref[l]
        ln1 = ln1_ref[l]
        h = _layernorm(attn + h, ln1[0:1, :], ln1[1:2, :])

        # feed-forward + residual + LayerNorm
        ff = jnp.dot(h, w1_ref[l], preferred_element_type=f32) + b1_ref[l]
        # TODO(synk): HF BERT uses erf-based GELU; tanh approximation used here.
        ff = jax.nn.gelu(ff, approximate=True)
        ff = jnp.dot(ff, w2_ref[l], preferred_element_type=f32) + b2_ref[l]
        ln2 = ln2_ref[l]
        h = _layernorm(ff + h, ln2[0:1, :], ln2[1:2, :])

    # ---- fused classifier heads ----
    span = jnp.dot(h, wspan_ref[...], preferred_element_type=f32) + bspan_ref[...]
    span_ref[...] = span                                            # [S, 4]

    cls = h[0:1, :]                                                 # CLS token
    sent = jnp.dot(cls, wsent_ref[...], preferred_element_type=f32) + bsent_ref[...]
    sent_ref[...] = sent.reshape(1, 1, 3)


def bert_forward_all(params, ids, mask, seg):
    """Runs the fused kernel once. Returns (span_scores [B,S,4], sent [B,3])."""
    B, S = ids.shape
    p = params['bert']

    ids_col = ids.reshape(B * S, 1).astype(jnp.int32)
    seg_col = seg.reshape(B * S, 1).astype(jnp.float32)
    mask_f = mask.reshape(B, 1, S).astype(jnp.float32)

    per_b2 = lambda b: (b, 0)
    per_b3 = lambda b: (b, 0, 0)
    const2 = lambda b: (0, 0)
    const3 = lambda b: (0, 0, 0)

    grid_spec = pltpu.PrefetchScalarGridSpec(
        num_scalar_prefetch=0,
        grid=(B,),
        in_specs=[
            pl.BlockSpec((SEQ, 1), per_b2),                              # ids
            pl.BlockSpec((SEQ, 1), per_b2),                              # seg
            pl.BlockSpec((1, 1, SEQ), per_b3),                           # mask
            pl.BlockSpec((VOCAB, HIDDEN), const2),                       # word_emb
            pl.BlockSpec((MAX_POS, HIDDEN), const2),                     # pos_emb
            pl.BlockSpec((TYPE_VOCAB, HIDDEN), const2),                  # type_emb
            pl.BlockSpec((2, HIDDEN), const2),                           # emb LN
            pl.BlockSpec((NUM_LAYERS, HIDDEN, 3 * HIDDEN), const3),      # wqkv
            pl.BlockSpec((NUM_LAYERS, 1, 3 * HIDDEN), const3),           # bqkv
            pl.BlockSpec((NUM_LAYERS, HIDDEN, HIDDEN), const3),          # wo
            pl.BlockSpec((NUM_LAYERS, 1, HIDDEN), const3),               # bo
            pl.BlockSpec((NUM_LAYERS, 2, HIDDEN), const3),               # ln1
            pl.BlockSpec((NUM_LAYERS, HIDDEN, INTERMEDIATE), const3),    # w1
            pl.BlockSpec((NUM_LAYERS, 1, INTERMEDIATE), const3),         # b1
            pl.BlockSpec((NUM_LAYERS, INTERMEDIATE, HIDDEN), const3),    # w2
            pl.BlockSpec((NUM_LAYERS, 1, HIDDEN), const3),               # b2
            pl.BlockSpec((NUM_LAYERS, 2, HIDDEN), const3),               # ln2
            pl.BlockSpec((HIDDEN, 4), const2),                           # w_span
            pl.BlockSpec((1, 4), const2),                                # b_span
            pl.BlockSpec((HIDDEN, 3), const2),                           # w_sent
            pl.BlockSpec((1, 3), const2),                                # b_sent
        ],
        out_specs=[
            pl.BlockSpec((SEQ, 4), per_b2),                              # span
            pl.BlockSpec((1, 1, 3), per_b3),                             # sentiment
        ],
    )

    span, sent = pl.pallas_call(
        _bert_kernel,
        grid_spec=grid_spec,
        out_shape=(jax.ShapeDtypeStruct((B * S, 4), jnp.float32),
                   jax.ShapeDtypeStruct((B, 1, 3), jnp.float32)),
        compiler_params=pltpu.CompilerParams(
            dimension_semantics=("parallel",)),
    )(ids_col, seg_col, mask_f,
      p['word_emb'], p['pos_emb'], p['type_emb'], p['emb_ln'],
      p['wqkv'], p['bqkv'], p['wo'], p['bo'], p['ln1'],
      p['w1'], p['b1'], p['w2'], p['b2'], p['ln2'],
      params['w_span'], params['b_span'], params['w_sent'], params['b_sent'])

    return span.reshape(B, S, 4), sent.reshape(B, 3)


# ---------------- BERTModel.forward -------------------------------------------
def bert_model_forward(params, query_tensor, query_mask, query_seg, step,
                       fused_outputs=None):
    """Mirrors BERTModel.forward; fused_outputs may be precomputed (shared)."""
    if fused_outputs is None:
        fused_outputs = bert_forward_all(params, query_tensor, query_mask,
                                         query_seg)
    span, sent = fused_outputs
    if step == 0:
        out_scores_start = span[..., 0:2]
        out_scores_end = span[..., 2:4]
        return out_scores_start, out_scores_end
    else:
        return sent


# ---------------- deterministic parameter init ---------------------------------
def init_params(key):
    keys = iter(jax.random.split(key, 64))

    def w(shape, scale=0.02):
        return jax.random.normal(next(keys), shape, jnp.float32) * scale

    ln_pair = jnp.stack([jnp.ones((HIDDEN,), jnp.float32),
                         jnp.zeros((HIDDEN,), jnp.float32)])           # [2, H]
    ln_stack = jnp.tile(ln_pair[None], (NUM_LAYERS, 1, 1))             # [L, 2, H]

    # TODO(synk): pretrained bert-base-uncased weights replaced by synthetic.
    bert = dict(
        word_emb=w((VOCAB, HIDDEN)),
        pos_emb=w((MAX_POS, HIDDEN)),
        type_emb=w((TYPE_VOCAB, HIDDEN)),
        emb_ln=ln_pair,
        wqkv=w((NUM_LAYERS, HIDDEN, 3 * HIDDEN)),
        bqkv=jnp.zeros((NUM_LAYERS, 1, 3 * HIDDEN), jnp.float32),
        wo=w((NUM_LAYERS, HIDDEN, HIDDEN)),
        bo=jnp.zeros((NUM_LAYERS, 1, HIDDEN), jnp.float32),
        ln1=ln_stack,
        w1=w((NUM_LAYERS, HIDDEN, INTERMEDIATE)),
        b1=jnp.zeros((NUM_LAYERS, 1, INTERMEDIATE), jnp.float32),
        w2=w((NUM_LAYERS, INTERMEDIATE, HIDDEN)),
        b2=jnp.zeros((NUM_LAYERS, 1, HIDDEN), jnp.float32),
        ln2=ln_stack,
    )
    return dict(
        bert=bert,
        w_span=w((HIDDEN, 4)),                 # [start(2) | end(2)] fused
        b_span=jnp.zeros((1, 4), jnp.float32),
        w_sent=w((HIDDEN, 3)),
        b_sent=jnp.zeros((1, 3), jnp.float32),
    )


# ---------------- main ----------------------------------------------------------
if __name__ == "__main__":
    key = jax.random.PRNGKey(0)
    k_params, k_ids = jax.random.split(key, 2)

    params = init_params(k_params)

    query_tensor = jax.random.randint(k_ids, (BATCH, SEQ), 0, VOCAB, dtype=jnp.int32)
    # first 6 tokens valid, last 2 padding
    query_mask = jnp.concatenate(
        [jnp.ones((BATCH, 6), jnp.int32), jnp.zeros((BATCH, SEQ - 6), jnp.int32)],
        axis=1)
    # first half segment 0, second half segment 1
    query_seg = jnp.concatenate(
        [jnp.zeros((BATCH, SEQ // 2), jnp.int32), jnp.ones((BATCH, SEQ // 2), jnp.int32)],
        axis=1)

    @jax.jit
    def run(params, ids, mask, seg):
        # the fused kernel runs ONCE; both output branches share its results
        fused = bert_forward_all(params, ids, mask, seg)
        start, end = bert_model_forward(params, ids, mask, seg, step=0,
                                        fused_outputs=fused)
        sent = bert_model_forward(params, ids, mask, seg, step=1,
                                  fused_outputs=fused)
        return start, end, sent

    start_scores, end_scores, sent_scores = run(
        params, query_tensor, query_mask, query_seg)
    jax.block_until_ready((start_scores, end_scores, sent_scores))

    assert start_scores.shape == (BATCH, SEQ, 2)
    assert end_scores.shape == (BATCH, SEQ, 2)
    assert sent_scores.shape == (BATCH, 3)
    print("KERNEL_OK")
</pallas_src>

<mosaic_0001>
module attributes {stable_mosaic.version = 11 : i64} {
  func.func @_bert_kernel(%arg0: i32, %arg1: memref<8x1xi32, #tpu.memory_space<vmem>>, %arg2: memref<8x1xf32, #tpu.memory_space<vmem>>, %arg3: memref<1x1x8xf32, #tpu.memory_space<vmem>>, %arg4: memref<64x32xf32, #tpu.memory_space<vmem>>, %arg5: memref<16x32xf32, #tpu.memory_space<vmem>>, %arg6: memref<2x32xf32, #tpu.memory_space<vmem>>, %arg7: memref<2x32xf32, #tpu.memory_space<vmem>>, %arg8: memref<2x32x96xf32, #tpu.memory_space<vmem>>, %arg9: memref<2x1x96xf32, #tpu.memory_space<vmem>>, %arg10: memref<2x32x32xf32, #tpu.memory_space<vmem>>, %arg11: memref<2x1x32xf32, #tpu.memory_space<vmem>>, %arg12: memref<2x2x32xf32, #tpu.memory_space<vmem>>, %arg13: memref<2x32x64xf32, #tpu.memory_space<vmem>>, %arg14: memref<2x1x64xf32, #tpu.memory_space<vmem>>, %arg15: memref<2x64x32xf32, #tpu.memory_space<vmem>>, %arg16: memref<2x1x32xf32, #tpu.memory_space<vmem>>, %arg17: memref<2x2x32xf32, #tpu.memory_space<vmem>>, %arg18: memref<32x4xf32, #tpu.memory_space<vmem>>, %arg19: memref<1x4xf32, #tpu.memory_space<vmem>>, %arg20: memref<32x3xf32, #tpu.memory_space<vmem>>, %arg21: memref<1x3xf32, #tpu.memory_space<vmem>>, %arg22: memref<8x4xf32, #tpu.memory_space<vmem>>, %arg23: memref<1x1x3xf32, #tpu.memory_space<vmem>>) attributes {dimension_semantics = [#tpu.dimension_semantics<parallel>], iteration_bounds = array<i64: 2>, scalar_prefetch = 0 : i64, scratch_operands = 0 : i64, tpu.core_type = #tpu.core_type<tc>, window_params = [{transform_indices = @transform_0, window_bounds = array<i64: 8, 1>}, {transform_indices = @transform_1, window_bounds = array<i64: 8, 1>}, {transform_indices = @transform_2, window_bounds = array<i64: 1, 1, 8>}, {pipeline_mode = #tpu.pipeline_mode<synchronous>, transform_indices = @transform_3, window_bounds = array<i64: 64, 32>}, {pipeline_mode = #tpu.pipeline_mode<synchronous>, transform_indices = @transform_4, window_bounds = array<i64: 16, 32>}, {pipeline_mode = #tpu.pipeline_mode<synchronous>, transform_indices = @transform_5, window_bounds = array<i64: 2, 32>}, {pipeline_mode = #tpu.pipeline_mode<synchronous>, transform_indices = @transform_6, window_bounds = array<i64: 2, 32>}, {pipeline_mode = #tpu.pipeline_mode<synchronous>, transform_indices = @transform_7, window_bounds = array<i64: 2, 32, 96>}, {pipeline_mode = #tpu.pipeline_mode<synchronous>, transform_indices = @transform_8, window_bounds = array<i64: 2, 1, 96>}, {pipeline_mode = #tpu.pipeline_mode<synchronous>, transform_indices = @transform_9, window_bounds = array<i64: 2, 32, 32>}, {pipeline_mode = #tpu.pipeline_mode<synchronous>, transform_indices = @transform_10, window_bounds = array<i64: 2, 1, 32>}, {pipeline_mode = #tpu.pipeline_mode<synchronous>, transform_indices = @transform_11, window_bounds = array<i64: 2, 2, 32>}, {pipeline_mode = #tpu.pipeline_mode<synchronous>, transform_indices = @transform_12, window_bounds = array<i64: 2, 32, 64>}, {pipeline_mode = #tpu.pipeline_mode<synchronous>, transform_indices = @transform_13, window_bounds = array<i64: 2, 1, 64>}, {pipeline_mode = #tpu.pipeline_mode<synchronous>, transform_indices = @transform_14, window_bounds = array<i64: 2, 64, 32>}, {pipeline_mode = #tpu.pipeline_mode<synchronous>, transform_indices = @transform_15, window_bounds = array<i64: 2, 1, 32>}, {pipeline_mode = #tpu.pipeline_mode<synchronous>, transform_indices = @transform_16, window_bounds = array<i64: 2, 2, 32>}, {pipeline_mode = #tpu.pipeline_mode<synchronous>, transform_indices = @transform_17, window_bounds = array<i64: 32, 4>}, {pipeline_mode = #tpu.pipeline_mode<synchronous>, transform_indices = @transform_18, window_bounds = array<i64: 1, 4>}, {pipeline_mode = #tpu.pipeline_mode<synchronous>, transform_indices = @transform_19, window_bounds = array<i64: 32, 3>}, {pipeline_mode = #tpu.pipeline_mode<synchronous>, transform_indices = @transform_20, window_bounds = array<i64: 1, 3>}, {transform_indices = @transform_21, window_bounds = array<i64: 8, 4>}, {transform_indices = @transform_22, window_bounds = array<i64: 1, 1, 3>}]} {
    %c0 = arith.constant 0 : index
    %c0_0 = arith.constant 0 : index
    %0 = vector.load %arg1[%c0, %c0_0] : memref<8x1xi32, #tpu.memory_space<vmem>>, vector<8x1xi32>
    %1 = tpu.iota {dimensions = array<i32: 1>} : vector<8x64xi32>
    %2 = vector.broadcast %0 : vector<8x1xi32> to vector<8x64xi32>
    %3 = arith.cmpi eq, %2, %1 : vector<8x64xi32>
    %4 = arith.extui %3 : vector<8x64xi1> to vector<8x64xi32>
    %5 = arith.sitofp %4 : vector<8x64xi32> to vector<8x64xf32>
    %c0_1 = arith.constant 0 : index
    %c0_2 = arith.constant 0 : index
    %6 = vector.load %arg4[%c0_1, %c0_2] : memref<64x32xf32, #tpu.memory_space<vmem>>, vector<64x32xf32>
    %cst = arith.constant dense<0.000000e+00> : vector<8x32xf32>
    %7 = tpu.matmul %5, %6, %cst {dimension_numbers = #tpu.dot_dimension_numbers<[1], [0], [0], [1], [0, 0, 1, 1], [], []>} : vector<8x64xf32>, vector<64x32xf32>, vector<8x32xf32> -> vector<8x32xf32>
    %8 = tpu.iota {dimensions = array<i32: 0>} : vector<8x16xi32>
    %9 = tpu.iota {dimensions = array<i32: 1>} : vector<8x16xi32>
    %10 = arith.cmpi eq, %8, %9 : vector<8x16xi32>
    %11 = arith.extui %10 : vector<8x16xi1> to vector<8x16xi32>
    %12 = arith.sitofp %11 : vector<8x16xi32> to vector<8x16xf32>
    %c0_3 = arith.constant 0 : index
    %c0_4 = arith.constant 0 : index
    %13 = vector.load %arg5[%c0_3, %c0_4] : memref<16x32xf32, #tpu.memory_space<vmem>>, vector<16x32xf32>
    %cst_5 = arith.constant dense<0.000000e+00> : vector<8x32xf32>
    %14 = tpu.matmul %12, %13, %cst_5 {dimension_numbers = #tpu.dot_dimension_numbers<[1], [0], [0], [1], [0, 0, 1, 1], [], []>} : vector<8x16xf32>, vector<16x32xf32>, vector<8x32xf32> -> vector<8x32xf32>
    %15 = arith.addf %7, %14 : vector<8x32xf32>
    %c0_6 = arith.constant 0 : index
    %c0_7 = arith.constant 0 : index
    %16 = vector.load %arg2[%c0_6, %c0_7] : memref<8x1xf32, #tpu.memory_space<vmem>>, vector<8x1xf32>
    %c0_8 = arith.constant 0 : index
    %c0_9 = arith.constant 0 : index
    %17 = vector.load %arg6[%c0_8, %c0_9] : memref<2x32xf32, #tpu.memory_space<vmem>>, vector<2x32xf32>
    %cst_10 = arith.constant 1.000000e+00 : f32
    %18 = vector.broadcast %cst_10 : f32 to vector<8x1xf32>
    %19 = arith.subf %18, %16 : vector<8x1xf32>
    %20 = vector.extract_strided_slice %17 {offsets = [0, 0], sizes = [1, 32], strides = [1, 1]} : vector<2x32xf32> to vector<1x32xf32>
    %21 = vector.broadcast %19 : vector<8x1xf32> to vector<8x32xf32>
    %22 = vector.broadcast %20 : vector<1x32xf32> to vector<8x32xf32>
    %23 = arith.mulf %21, %22 : vector<8x32xf32>
    %24 = arith.addf %15, %23 : vector<8x32xf32>
    %25 = vector.extract_strided_slice %17 {offsets = [1, 0], sizes = [1, 32], strides = [1, 1]} : vector<2x32xf32> to vector<1x32xf32>
    %26 = vector.broadcast %16 : vector<8x1xf32> to vector<8x32xf32>
    %27 = vector.broadcast %25 : vector<1x32xf32> to vector<8x32xf32>
    %28 = arith.mulf %26, %27 : vector<8x32xf32>
    %29 = arith.addf %24, %28 : vector<8x32xf32>
    %c0_11 = arith.constant 0 : index
    %c0_12 = arith.constant 0 : index
    %30 = vector.load %arg7[%c0_11, %c0_12] : memref<2x32xf32, #tpu.memory_space<vmem>>, vector<2x32xf32>
    %31 = vector.extract_strided_slice %30 {offsets = [0, 0], sizes = [1, 32], strides = [1, 1]} : vector<2x32xf32> to vector<1x32xf32>
    %32 = vector.extract_strided_slice %30 {offsets = [1, 0], sizes = [1, 32], strides = [1, 1]} : vector<2x32xf32> to vector<1x32xf32>
    %cst_13 = arith.constant dense<0.000000e+00> : vector<8xf32>
    %33 = vector.multi_reduction <add>, %29, %cst_13 [1] : vector<8x32xf32> to vector<8xf32>
    %34 = vector.shape_cast %33 : vector<8xf32> to vector<8x1xf32>
    %cst_14 = arith.constant 3.200000e+01 : f32
    %35 = vector.broadcast %cst_14 : f32 to vector<8x1xf32>
    %36 = arith.divf %34, %35 : vector<8x1xf32>
    %37 = vector.broadcast %36 : vector<8x1xf32> to vector<8x32xf32>
    %38 = arith.subf %29, %37 : vector<8x32xf32>
    %39 = arith.mulf %38, %38 : vector<8x32xf32>
    %cst_15 = arith.constant dense<0.000000e+00> : vector<8xf32>
    %40 = vector.multi_reduction <add>, %39, %cst_15 [1] : vector<8x32xf32> to vector<8xf32>
    %41 = vector.shape_cast %40 : vector<8xf32> to vector<8x1xf32>
    %cst_16 = arith.constant 3.200000e+01 : f32
    %42 = vector.broadcast %cst_16 : f32 to vector<8x1xf32>
    %43 = arith.divf %41, %42 : vector<8x1xf32>
    %cst_17 = arith.constant 9.99999996E-13 : f32
    %44 = vector.broadcast %cst_17 : f32 to vector<8x1xf32>
    %45 = arith.addf %43, %44 : vector<8x1xf32>
    %46 = math.rsqrt %45 : vector<8x1xf32>
    %47 = vector.broadcast %36 : vector<8x1xf32> to vector<8x32xf32>
    %48 = arith.subf %29, %47 : vector<8x32xf32>
    %49 = vector.broadcast %46 : vector<8x1xf32> to vector<8x32xf32>
    %50 = arith.mulf %48, %49 : vector<8x32xf32>
    %51 = vector.broadcast %31 : vector<1x32xf32> to vector<8x32xf32>
    %52 = arith.mulf %50, %51 : vector<8x32xf32>
    %53 = vector.broadcast %32 : vector<1x32xf32> to vector<8x32xf32>
    %54 = arith.addf %52, %53 : vector<8x32xf32>
    %c0_18 = arith.constant 0 : index
    %c0_19 = arith.constant 0 : index
    %c0_20 = arith.constant 0 : index
    %55 = vector.load %arg3[%c0_18, %c0_19, %c0_20] : memref<1x1x8xf32, #tpu.memory_space<vmem>>, vector<1x1x8xf32>
    %56 = vector.shape_cast %55 : vector<1x1x8xf32> to vector<1x8xf32>
    %cst_21 = arith.constant 1.000000e+00 : f32
    %57 = vector.broadcast %cst_21 : f32 to vector<1x8xf32>
    %58 = arith.subf %57, %56 : vector<1x8xf32>
    %cst_22 = arith.constant -1.000000e+09 : f32
    %59 = vector.broadcast %cst_22 : f32 to vector<1x8xf32>
    %60 = arith.mulf %58, %59 : vector<1x8xf32>
    %61 = vector.shape_cast %60 : vector<1x8xf32> to vector<1x1x8xf32>
    %c0_23 = arith.constant 0 : index
    %c0_24 = arith.constant 0 : index
    %c0_25 = arith.constant 0 : index
    %62 = vector.load %arg8[%c0_23, %c0_24, %c0_25] : memref<2x32x96xf32, #tpu.memory_space<vmem>>, vector<1x32x96xf32>
    %63 = vector.shape_cast %62 : vector<1x32x96xf32> to vector<32x96xf32>
    %cst_26 = arith.constant dense<0.000000e+00> : vector<8x96xf32>
    %64 = tpu.matmul %54, %63, %cst_26 {dimension_numbers = #tpu.dot_dimension_numbers<[1], [0], [0], [1], [0, 0, 1, 1], [], []>} : vector<8x32xf32>, vector<32x96xf32>, vector<8x96xf32> -> vector<8x96xf32>
    %c0_27 = arith.constant 0 : index
    %c0_28 = arith.constant 0 : index
    %c0_29 = arith.constant 0 : index
    %65 = vector.load %arg9[%c0_27, %c0_28, %c0_29] : memref<2x1x96xf32, #tpu.memory_space<vmem>>, vector<1x1x96xf32>
    %66 = vector.shape_cast %65 : vector<1x1x96xf32> to vector<1x96xf32>
    %67 = vector.broadcast %66 : vector<1x96xf32> to vector<8x96xf32>
    %68 = arith.addf %64, %67 : vector<8x96xf32>
    %69 = vector.extract_strided_slice %68 {offsets = [0, 0], sizes = [8, 32], strides = [1, 1]} : vector<8x96xf32> to vector<8x32xf32>
    %70 = vector.extract_strided_slice %68 {offsets = [0, 32], sizes = [8, 32], strides = [1, 1]} : vector<8x96xf32> to vector<8x32xf32>
    %71 = vector.extract_strided_slice %68 {offsets = [0, 64], sizes = [8, 32], strides = [1, 1]} : vector<8x96xf32> to vector<8x32xf32>
    %72 = vector.extract_strided_slice %69 {offsets = [0, 0], sizes = [8, 8], strides = [1, 1]} : vector<8x32xf32> to vector<8x8xf32>
    %73 = vector.extract_strided_slice %69 {offsets = [0, 8], sizes = [8, 8], strides = [1, 1]} : vector<8x32xf32> to vector<8x8xf32>
    %74 = vector.extract_strided_slice %69 {offsets = [0, 16], sizes = [8, 8], strides = [1, 1]} : vector<8x32xf32> to vector<8x8xf32>
    %75 = vector.extract_strided_slice %69 {offsets = [0, 24], sizes = [8, 8], strides = [1, 1]} : vector<8x32xf32> to vector<8x8xf32>
    %76 = vector.shape_cast %72 : vector<8x8xf32> to vector<1x8x8xf32>
    %77 = vector.shape_cast %73 : vector<8x8xf32> to vector<1x8x8xf32>
    %78 = vector.shape_cast %74 : vector<8x8xf32> to vector<1x8x8xf32>
    %79 = vector.shape_cast %75 : vector<8x8xf32> to vector<1x8x8xf32>
    %80 = tpu.concatenate %76, %77, %78, %79 in 0 : vector<1x8x8xf32>, vector<1x8x8xf32>, vector<1x8x8xf32>, vector<1x8x8xf32> -> vector<4x8x8xf32>
    %81 = vector.extract_strided_slice %70 {offsets = [0, 0], sizes = [8, 8], strides = [1, 1]} : vector<8x32xf32> to vector<8x8xf32>
    %82 = vector.extract_strided_slice %70 {offsets = [0, 8], sizes = [8, 8], strides = [1, 1]} : vector<8x32xf32> to vector<8x8xf32>
    %83 = vector.extract_strided_slice %70 {offsets = [0, 16], sizes = [8, 8], strides = [1, 1]} : vector<8x32xf32> to vector<8x8xf32>
    %84 = vector.extract_strided_slice %70 {offsets = [0, 24], sizes = [8, 8], strides = [1, 1]} : vector<8x32xf32> to vector<8x8xf32>
    %85 = vector.shape_cast %81 : vector<8x8xf32> to vector<1x8x8xf32>
    %86 = vector.shape_cast %82 : vector<8x8xf32> to vector<1x8x8xf32>
    %87 = vector.shape_cast %83 : vector<8x8xf32> to vector<1x8x8xf32>
    %88 = vector.shape_cast %84 : vector<8x8xf32> to vector<1x8x8xf32>
    %89 = tpu.concatenate %85, %86, %87, %88 in 0 : vector<1x8x8xf32>, vector<1x8x8xf32>, vector<1x8x8xf32>, vector<1x8x8xf32> -> vector<4x8x8xf32>
    %90 = vector.extract_strided_slice %71 {offsets = [0, 0], sizes = [8, 8], strides = [1, 1]} : vector<8x32xf32> to vector<8x8xf32>
    %91 = vector.extract_strided_slice %71 {offsets = [0, 8], sizes = [8, 8], strides = [1, 1]} : vector<8x32xf32> to vector<8x8xf32>
    %92 = vector.extract_strided_slice %71 {offsets = [0, 16], sizes = [8, 8], strides = [1, 1]} : vector<8x32xf32> to vector<8x8xf32>
    %93 = vector.extract_strided_slice %71 {offsets = [0, 24], sizes = [8, 8], strides = [1, 1]} : vector<8x32xf32> to vector<8x8xf32>
    %94 = vector.shape_cast %90 : vector<8x8xf32> to vector<1x8x8xf32>
    %95 = vector.shape_cast %91 : vector<8x8xf32> to vector<1x8x8xf32>
    %96 = vector.shape_cast %92 : vector<8x8xf32> to vector<1x8x8xf32>
    %97 = vector.shape_cast %93 : vector<8x8xf32> to vector<1x8x8xf32>
    %98 = tpu.concatenate %94, %95, %96, %97 in 0 : vector<1x8x8xf32>, vector<1x8x8xf32>, vector<1x8x8xf32>, vector<1x8x8xf32> -> vector<4x8x8xf32>
    "tpu.trace_start"() <{level = 10 : i32, message = "nqd,nkd->nqk"}> : () -> ()
    %cst_30 = arith.constant dense<0.000000e+00> : vector<4x8x8xf32>
    %99 = tpu.matmul %80, %89, %cst_30 {dimension_numbers = #tpu.dot_dimension_numbers<[2], [2], [1], [1], [0, 0, 0, 1, 1, 1], [0], [0]>} : vector<4x8x8xf32>, vector<4x8x8xf32>, vector<4x8x8xf32> -> vector<4x8x8xf32>
    "tpu.trace_stop"() : () -> ()
    %cst_31 = arith.constant 0.353553385 : f32
    %100 = vector.broadcast %cst_31 : f32 to vector<4x8x8xf32>
    %101 = arith.mulf %99, %100 : vector<4x8x8xf32>
    %102 = vector.broadcast %61 : vector<1x1x8xf32> to vector<4x8x8xf32>
    %103 = arith.addf %101, %102 : vector<4x8x8xf32>
    %cst_32 = arith.constant dense<0xFF800000> : vector<4x8xf32>
    %104 = vector.multi_reduction <maximumf>, %103, %cst_32 [2] : vector<4x8x8xf32> to vector<4x8xf32>
    %105 = vector.shape_cast %104 : vector<4x8xf32> to vector<4x8x1xf32>
    %106 = vector.broadcast %105 : vector<4x8x1xf32> to vector<4x8x8xf32>
    %107 = arith.subf %103, %106 : vector<4x8x8xf32>
    %108 = math.exp %107 : vector<4x8x8xf32>
    %cst_33 = arith.constant dense<0.000000e+00> : vector<4x8xf32>
    %109 = vector.multi_reduction <add>, %108, %cst_33 [2] : vector<4x8x8xf32> to vector<4x8xf32>
    %110 = vector.shape_cast %109 : vector<4x8xf32> to vector<4x8x1xf32>
    %111 = tpu.reciprocal %110 {approx = true} : vector<4x8x1xf32> -> vector<4x8x1xf32>
    %112 = vector.broadcast %111 : vector<4x8x1xf32> to vector<4x8x8xf32>
    %113 = arith.mulf %108, %112 : vector<4x8x8xf32>
    "tpu.trace_start"() <{level = 10 : i32, message = "nqk,nkd->nqd"}> : () -> ()
    %cst_34 = arith.constant dense<0.000000e+00> : vector<4x8x8xf32>
    %114 = tpu.matmul %113, %98, %cst_34 {dimension_numbers = #tpu.dot_dimension_numbers<[2], [1], [1], [2], [0, 0, 0, 1, 1, 2], [0], [0]>} : vector<4x8x8xf32>, vector<4x8x8xf32>, vector<4x8x8xf32> -> vector<4x8x8xf32>
    "tpu.trace_stop"() : () -> ()
    %115 = vector.extract_strided_slice %114 {offsets = [0, 0, 0], sizes = [1, 8, 8], strides = [1, 1, 1]} : vector<4x8x8xf32> to vector<1x8x8xf32>
    %116 = vector.shape_cast %115 : vector<1x8x8xf32> to vector<8x8xf32>
    %117 = vector.extract_strided_slice %114 {offsets = [1, 0, 0], sizes = [1, 8, 8], strides = [1, 1, 1]} : vector<4x8x8xf32> to vector<1x8x8xf32>
    %118 = vector.shape_cast %117 : vector<1x8x8xf32> to vector<8x8xf32>
    %119 = vector.extract_strided_slice %114 {offsets = [2, 0, 0], sizes = [1, 8, 8], strides = [1, 1, 1]} : vector<4x8x8xf32> to vector<1x8x8xf32>
    %120 = vector.shape_cast %119 : vector<1x8x8xf32> to vector<8x8xf32>
    %121 = vector.extract_strided_slice %114 {offsets = [3, 0, 0], sizes = [1, 8, 8], strides = [1, 1, 1]} : vector<4x8x8xf32> to vector<1x8x8xf32>
    %122 = vector.shape_cast %121 : vector<1x8x8xf32> to vector<8x8xf32>
    %123 = tpu.concatenate %116, %118, %120, %122 in 1 : vector<8x8xf32>, vector<8x8xf32>, vector<8x8xf32>, vector<8x8xf32> -> vector<8x32xf32>
    %c0_35 = arith.constant 0 : index
    %c0_36 = arith.constant 0 : index
    %c0_37 = arith.constant 0 : index
    %124 = vector.load %arg10[%c0_35, %c0_36, %c0_37] : memref<2x32x32xf32, #tpu.memory_space<vmem>>, vector<1x32x32xf32>
    %125 = vector.shape_cast %124 : vector<1x32x32xf32> to vector<32x32xf32>
    %cst_38 = arith.constant dense<0.000000e+00> : vector<8x32xf32>
    %126 = tpu.matmul %123, %125, %cst_38 {dimension_numbers = #tpu.dot_dimension_numbers<[1], [0], [0], [1], [0, 0, 1, 1], [], []>} : vector<8x32xf32>, vector<32x32xf32>, vector<8x32xf32> -> vector<8x32xf32>
    %c0_39 = arith.constant 0 : index
    %c0_40 = arith.constant 0 : index
    %c0_41 = arith.constant 0 : index
    %127 = vector.load %arg11[%c0_39, %c0_40, %c0_41] : memref<2x1x32xf32, #tpu.memory_space<vmem>>, vector<1x1x32xf32>
    %128 = vector.shape_cast %127 : vector<1x1x32xf32> to vector<1x32xf32>
    %129 = vector.broadcast %128 : vector<1x32xf32> to vector<8x32xf32>
    %130 = arith.addf %126, %129 : vector<8x32xf32>
    %c0_42 = arith.constant 0 : index
    %c0_43 = arith.constant 0 : index
    %c0_44 = arith.constant 0 : index
    %131 = vector.load %arg12[%c0_42, %c0_43, %c0_44] : memref<2x2x32xf32, #tpu.memory_space<vmem>>, vector<1x2x32xf32>
    %132 = vector.shape_cast %131 : vector<1x2x32xf32> to vector<2x32xf32>
    %133 = arith.addf %130, %54 : vector<8x32xf32>
    %134 = vector.extract_strided_slice %132 {offsets = [0, 0], sizes = [1, 32], strides = [1, 1]} : vector<2x32xf32> to vector<1x32xf32>
    %135 = vector.extract_strided_slice %132 {offsets = [1, 0], sizes = [1, 32], strides = [1, 1]} : vector<2x32xf32> to vector<1x32xf32>
    %cst_45 = arith.constant dense<0.000000e+00> : vector<8xf32>
    %136 = vector.multi_reduction <add>, %133, %cst_45 [1] : vector<8x32xf32> to vector<8xf32>
    %137 = vector.shape_cast %136 : vector<8xf32> to vector<8x1xf32>
    %cst_46 = arith.constant 3.200000e+01 : f32
    %138 = vector.broadcast %cst_46 : f32 to vector<8x1xf32>
    %139 = arith.divf %137, %138 : vector<8x1xf32>
    %140 = vector.broadcast %139 : vector<8x1xf32> to vector<8x32xf32>
    %141 = arith.subf %133, %140 : vector<8x32xf32>
    %142 = arith.mulf %141, %141 : vector<8x32xf32>
    %cst_47 = arith.constant dense<0.000000e+00> : vector<8xf32>
    %143 = vector.multi_reduction <add>, %142, %cst_47 [1] : vector<8x32xf32> to vector<8xf32>
    %144 = vector.shape_cast %143 : vector<8xf32> to vector<8x1xf32>
    %cst_48 = arith.constant 3.200000e+01 : f32
    %145 = vector.broadcast %cst_48 : f32 to vector<8x1xf32>
    %146 = arith.divf %144, %145 : vector<8x1xf32>
    %cst_49 = arith.constant 9.99999996E-13 : f32
    %147 = vector.broadcast %cst_49 : f32 to vector<8x1xf32>
    %148 = arith.addf %146, %147 : vector<8x1xf32>
    %149 = math.rsqrt %148 : vector<8x1xf32>
    %150 = vector.broadcast %139 : vector<8x1xf32> to vector<8x32xf32>
    %151 = arith.subf %133, %150 : vector<8x32xf32>
    %152 = vector.broadcast %149 : vector<8x1xf32> to vector<8x32xf32>
    %153 = arith.mulf %151, %152 : vector<8x32xf32>
    %154 = vector.broadcast %134 : vector<1x32xf32> to vector<8x32xf32>
    %155 = arith.mulf %153, %154 : vector<8x32xf32>
    %156 = vector.broadcast %135 : vector<1x32xf32> to vector<8x32xf32>
    %157 = arith.addf %155, %156 : vector<8x32xf32>
    %c0_50 = arith.constant 0 : index
    %c0_51 = arith.constant 0 : index
    %c0_52 = arith.constant 0 : index
    %158 = vector.load %arg13[%c0_50, %c0_51, %c0_52] : memref<2x32x64xf32, #tpu.memory_space<vmem>>, vector<1x32x64xf32>
    %159 = vector.shape_cast %158 : vector<1x32x64xf32> to vector<32x64xf32>
    %cst_53 = arith.constant dense<0.000000e+00> : vector<8x64xf32>
    %160 = tpu.matmul %157, %159, %cst_53 {dimension_numbers = #tpu.dot_dimension_numbers<[1], [0], [0], [1], [0, 0, 1, 1], [], []>} : vector<8x32xf32>, vector<32x64xf32>, vector<8x64xf32> -> vector<8x64xf32>
    %c0_54 = arith.constant 0 : index
    %c0_55 = arith.constant 0 : index
    %c0_56 = arith.constant 0 : index
    %161 = vector.load %arg14[%c0_54, %c0_55, %c0_56] : memref<2x1x64xf32, #tpu.memory_space<vmem>>, vector<1x1x64xf32>
    %162 = vector.shape_cast %161 : vector<1x1x64xf32> to vector<1x64xf32>
    %163 = vector.broadcast %162 : vector<1x64xf32> to vector<8x64xf32>
    %164 = arith.addf %160, %163 : vector<8x64xf32>
    %165 = arith.mulf %164, %164 : vector<8x64xf32>
    %166 = arith.mulf %164, %165 : vector<8x64xf32>
    %cst_57 = arith.constant 4.471500e-02 : f32
    %167 = vector.broadcast %cst_57 : f32 to vector<8x64xf32>
    %168 = arith.mulf %167, %166 : vector<8x64xf32>
    %169 = arith.addf %164, %168 : vector<8x64xf32>
    %cst_58 = arith.constant 0.797884583 : f32
    %170 = vector.broadcast %cst_58 : f32 to vector<8x64xf32>
    %171 = arith.mulf %170, %169 : vector<8x64xf32>
    %172 = math.tanh %171 : vector<8x64xf32>
    %cst_59 = arith.constant 1.000000e+00 : f32
    %173 = vector.broadcast %cst_59 : f32 to vector<8x64xf32>
    %174 = arith.addf %173, %172 : vector<8x64xf32>
    %cst_60 = arith.constant 5.000000e-01 : f32
    %175 = vector.broadcast %cst_60 : f32 to vector<8x64xf32>
    %176 = arith.mulf %175, %174 : vector<8x64xf32>
    %177 = arith.mulf %164, %176 : vector<8x64xf32>
    %c0_61 = arith.constant 0 : index
    %c0_62 = arith.constant 0 : index
    %c0_63 = arith.constant 0 : index
    %178 = vector.load %arg15[%c0_61, %c0_62, %c0_63] : memref<2x64x32xf32, #tpu.memory_space<vmem>>, vector<1x64x32xf32>
    %179 = vector.shape_cast %178 : vector<1x64x32xf32> to vector<64x32xf32>
    %cst_64 = arith.constant dense<0.000000e+00> : vector<8x32xf32>
    %180 = tpu.matmul %177, %179, %cst_64 {dimension_numbers = #tpu.dot_dimension_numbers<[1], [0], [0], [1], [0, 0, 1, 1], [], []>} : vector<8x64xf32>, vector<64x32xf32>, vector<8x32xf32> -> vector<8x32xf32>
    %c0_65 = arith.constant 0 : index
    %c0_66 = arith.constant 0 : index
    %c0_67 = arith.constant 0 : index
    %181 = vector.load %arg16[%c0_65, %c0_66, %c0_67] : memref<2x1x32xf32, #tpu.memory_space<vmem>>, vector<1x1x32xf32>
    %182 = vector.shape_cast %181 : vector<1x1x32xf32> to vector<1x32xf32>
    %183 = vector.broadcast %182 : vector<1x32xf32> to vector<8x32xf32>
    %184 = arith.addf %180, %183 : vector<8x32xf32>
    %c0_68 = arith.constant 0 : index
    %c0_69 = arith.constant 0 : index
    %c0_70 = arith.constant 0 : index
    %185 = vector.load %arg17[%c0_68, %c0_69, %c0_70] : memref<2x2x32xf32, #tpu.memory_space<vmem>>, vector<1x2x32xf32>
    %186 = vector.shape_cast %185 : vector<1x2x32xf32> to vector<2x32xf32>
    %187 = arith.addf %184, %157 : vector<8x32xf32>
    %188 = vector.extract_strided_slice %186 {offsets = [0, 0], sizes = [1, 32], strides = [1, 1]} : vector<2x32xf32> to vector<1x32xf32>
    %189 = vector.extract_strided_slice %186 {offsets = [1, 0], sizes = [1, 32], strides = [1, 1]} : vector<2x32xf32> to vector<1x32xf32>
    %cst_71 = arith.constant dense<0.000000e+00> : vector<8xf32>
    %190 = vector.multi_reduction <add>, %187, %cst_71 [1] : vector<8x32xf32> to vector<8xf32>
    %191 = vector.shape_cast %190 : vector<8xf32> to vector<8x1xf32>
    %cst_72 = arith.constant 3.200000e+01 : f32
    %192 = vector.broadcast %cst_72 : f32 to vector<8x1xf32>
    %193 = arith.divf %191, %192 : vector<8x1xf32>
    %194 = vector.broadcast %193 : vector<8x1xf32> to vector<8x32xf32>
    %195 = arith.subf %187, %194 : vector<8x32xf32>
    %196 = arith.mulf %195, %195 : vector<8x32xf32>
    %cst_73 = arith.constant dense<0.000000e+00> : vector<8xf32>
    %197 = vector.multi_reduction <add>, %196, %cst_73 [1] : vector<8x32xf32> to vector<8xf32>
    %198 = vector.shape_cast %197 : vector<8xf32> to vector<8x1xf32>
    %cst_74 = arith.constant 3.200000e+01 : f32
    %199 = vector.broadcast %cst_74 : f32 to vector<8x1xf32>
    %200 = arith.divf %198, %199 : vector<8x1xf32>
    %cst_75 = arith.constant 9.99999996E-13 : f32
    %201 = vector.broadcast %cst_75 : f32 to vector<8x1xf32>
    %202 = arith.addf %200, %201 : vector<8x1xf32>
    %203 = math.rsqrt %202 : vector<8x1xf32>
    %204 = vector.broadcast %193 : vector<8x1xf32> to vector<8x32xf32>
    %205 = arith.subf %187, %204 : vector<8x32xf32>
    %206 = vector.broadcast %203 : vector<8x1xf32> to vector<8x32xf32>
    %207 = arith.mulf %205, %206 : vector<8x32xf32>
    %208 = vector.broadcast %188 : vector<1x32xf32> to vector<8x32xf32>
    %209 = arith.mulf %207, %208 : vector<8x32xf32>
    %210 = vector.broadcast %189 : vector<1x32xf32> to vector<8x32xf32>
    %211 = arith.addf %209, %210 : vector<8x32xf32>
    %c1 = arith.constant 1 : index
    %c0_76 = arith.constant 0 : index
    %c0_77 = arith.constant 0 : index
    %212 = vector.load %arg8[%c1, %c0_76, %c0_77] : memref<2x32x96xf32, #tpu.memory_space<vmem>>, vector<1x32x96xf32>
    %213 = vector.shape_cast %212 : vector<1x32x96xf32> to vector<32x96xf32>
    %cst_78 = arith.constant dense<0.000000e+00> : vector<8x96xf32>
    %214 = tpu.matmul %211, %213, %cst_78 {dimension_numbers = #tpu.dot_dimension_numbers<[1], [0], [0], [1], [0, 0, 1, 1], [], []>} : vector<8x32xf32>, vector<32x96xf32>, vector<8x96xf32> -> vector<8x96xf32>
    %c1_79 = arith.constant 1 : index
    %c0_80 = arith.constant 0 : index
    %c0_81 = arith.constant 0 : index
    %215 = vector.load %arg9[%c1_79, %c0_80, %c0_81] : memref<2x1x96xf32, #tpu.memory_space<vmem>>, vector<1x1x96xf32>
    %216 = vector.shape_cast %215 : vector<1x1x96xf32> to vector<1x96xf32>
    %217 = vector.broadcast %216 : vector<1x96xf32> to vector<8x96xf32>
    %218 = arith.addf %214, %217 : vector<8x96xf32>
    %219 = vector.extract_strided_slice %218 {offsets = [0, 0], sizes = [8, 32], strides = [1, 1]} : vector<8x96xf32> to vector<8x32xf32>
    %220 = vector.extract_strided_slice %218 {offsets = [0, 32], sizes = [8, 32], strides = [1, 1]} : vector<8x96xf32> to vector<8x32xf32>
    %221 = vector.extract_strided_slice %218 {offsets = [0, 64], sizes = [8, 32], strides = [1, 1]} : vector<8x96xf32> to vector<8x32xf32>
    %222 = vector.extract_strided_slice %219 {offsets = [0, 0], sizes = [8, 8], strides = [1, 1]} : vector<8x32xf32> to vector<8x8xf32>
    %223 = vector.extract_strided_slice %219 {offsets = [0, 8], sizes = [8, 8], strides = [1, 1]} : vector<8x32xf32> to vector<8x8xf32>
    %224 = vector.extract_strided_slice %219 {offsets = [0, 16], sizes = [8, 8], strides = [1, 1]} : vector<8x32xf32> to vector<8x8xf32>
    %225 = vector.extract_strided_slice %219 {offsets = [0, 24], sizes = [8, 8], strides = [1, 1]} : vector<8x32xf32> to vector<8x8xf32>
    %226 = vector.shape_cast %222 : vector<8x8xf32> to vector<1x8x8xf32>
    %227 = vector.shape_cast %223 : vector<8x8xf32> to vector<1x8x8xf32>
    %228 = vector.shape_cast %224 : vector<8x8xf32> to vector<1x8x8xf32>
    %229 = vector.shape_cast %225 : vector<8x8xf32> to vector<1x8x8xf32>
    %230 = tpu.concatenate %226, %227, %228, %229 in 0 : vector<1x8x8xf32>, vector<1x8x8xf32>, vector<1x8x8xf32>, vector<1x8x8xf32> -> vector<4x8x8xf32>
    %231 = vector.extract_strided_slice %220 {offsets = [0, 0], sizes = [8, 8], strides = [1, 1]} : vector<8x32xf32> to vector<8x8xf32>
    %232 = vector.extract_strided_slice %220 {offsets = [0, 8], sizes = [8, 8], strides = [1, 1]} : vector<8x32xf32> to vector<8x8xf32>
    %233 = vector.extract_strided_slice %220 {offsets = [0, 16], sizes = [8, 8], strides = [1, 1]} : vector<8x32xf32> to vector<8x8xf32>
    %234 = vector.extract_strided_slice %220 {offsets = [0, 24], sizes = [8, 8], strides = [1, 1]} : vector<8x32xf32> to vector<8x8xf32>
    %235 = vector.shape_cast %231 : vector<8x8xf32> to vector<1x8x8xf32>
    %236 = vector.shape_cast %232 : vector<8x8xf32> to vector<1x8x8xf32>
    %237 = vector.shape_cast %233 : vector<8x8xf32> to vector<1x8x8xf32>
    %238 = vector.shape_cast %234 : vector<8x8xf32> to vector<1x8x8xf32>
    %239 = tpu.concatenate %235, %236, %237, %238 in 0 : vector<1x8x8xf32>, vector<1x8x8xf32>, vector<1x8x8xf32>, vector<1x8x8xf32> -> vector<4x8x8xf32>
    %240 = vector.extract_strided_slice %221 {offsets = [0, 0], sizes = [8, 8], strides = [1, 1]} : vector<8x32xf32> to vector<8x8xf32>
    %241 = vector.extract_strided_slice %221 {offsets = [0, 8], sizes = [8, 8], strides = [1, 1]} : vector<8x32xf32> to vector<8x8xf32>
    %242 = vector.extract_strided_slice %221 {offsets = [0, 16], sizes = [8, 8], strides = [1, 1]} : vector<8x32xf32> to vector<8x8xf32>
    %243 = vector.extract_strided_slice %221 {offsets = [0, 24], sizes = [8, 8], strides = [1, 1]} : vector<8x32xf32> to vector<8x8xf32>
    %244 = vector.shape_cast %240 : vector<8x8xf32> to vector<1x8x8xf32>
    %245 = vector.shape_cast %241 : vector<8x8xf32> to vector<1x8x8xf32>
    %246 = vector.shape_cast %242 : vector<8x8xf32> to vector<1x8x8xf32>
    %247 = vector.shape_cast %243 : vector<8x8xf32> to vector<1x8x8xf32>
    %248 = tpu.concatenate %244, %245, %246, %247 in 0 : vector<1x8x8xf32>, vector<1x8x8xf32>, vector<1x8x8xf32>, vector<1x8x8xf32> -> vector<4x8x8xf32>
    "tpu.trace_start"() <{level = 10 : i32, message = "nqd,nkd->nqk"}> : () -> ()
    %cst_82 = arith.constant dense<0.000000e+00> : vector<4x8x8xf32>
    %249 = tpu.matmul %230, %239, %cst_82 {dimension_numbers = #tpu.dot_dimension_numbers<[2], [2], [1], [1], [0, 0, 0, 1, 1, 1], [0], [0]>} : vector<4x8x8xf32>, vector<4x8x8xf32>, vector<4x8x8xf32> -> vector<4x8x8xf32>
    "tpu.trace_stop"() : () -> ()
    %cst_83 = arith.constant 0.353553385 : f32
    %250 = vector.broadcast %cst_83 : f32 to vector<4x8x8xf32>
    %251 = arith.mulf %249, %250 : vector<4x8x8xf32>
    %252 = vector.broadcast %61 : vector<1x1x8xf32> to vector<4x8x8xf32>
    %253 = arith.addf %251, %252 : vector<4x8x8xf32>
    %cst_84 = arith.constant dense<0xFF800000> : vector<4x8xf32>
    %254 = vector.multi_reduction <maximumf>, %253, %cst_84 [2] : vector<4x8x8xf32> to vector<4x8xf32>
    %255 = vector.shape_cast %254 : vector<4x8xf32> to vector<4x8x1xf32>
    %256 = vector.broadcast %255 : vector<4x8x1xf32> to vector<4x8x8xf32>
    %257 = arith.subf %253, %256 : vector<4x8x8xf32>
    %258 = math.exp %257 : vector<4x8x8xf32>
    %cst_85 = arith.constant dense<0.000000e+00> : vector<4x8xf32>
    %259 = vector.multi_reduction <add>, %258, %cst_85 [2] : vector<4x8x8xf32> to vector<4x8xf32>
    %260 = vector.shape_cast %259 : vector<4x8xf32> to vector<4x8x1xf32>
    %261 = tpu.reciprocal %260 {approx = true} : vector<4x8x1xf32> -> vector<4x8x1xf32>
    %262 = vector.broadcast %261 : vector<4x8x1xf32> to vector<4x8x8xf32>
    %263 = arith.mulf %258, %262 : vector<4x8x8xf32>
    "tpu.trace_start"() <{level = 10 : i32, message = "nqk,nkd->nqd"}> : () -> ()
    %cst_86 = arith.constant dense<0.000000e+00> : vector<4x8x8xf32>
    %264 = tpu.matmul %263, %248, %cst_86 {dimension_numbers = #tpu.dot_dimension_numbers<[2], [1], [1], [2], [0, 0, 0, 1, 1, 2], [0], [0]>} : vector<4x8x8xf32>, vector<4x8x8xf32>, vector<4x8x8xf32> -> vector<4x8x8xf32>
    "tpu.trace_stop"() : () -> ()
    %265 = vector.extract_strided_slice %264 {offsets = [0, 0, 0], sizes = [1, 8, 8], strides = [1, 1, 1]} : vector<4x8x8xf32> to vector<1x8x8xf32>
    %266 = vector.shape_cast %265 : vector<1x8x8xf32> to vector<8x8xf32>
    %267 = vector.extract_strided_slice %264 {offsets = [1, 0, 0], sizes = [1, 8, 8], strides = [1, 1, 1]} : vector<4x8x8xf32> to vector<1x8x8xf32>
    %268 = vector.shape_cast %267 : vector<1x8x8xf32> to vector<8x8xf32>
    %269 = vector.extract_strided_slice %264 {offsets = [2, 0, 0], sizes = [1, 8, 8], strides = [1, 1, 1]} : vector<4x8x8xf32> to vector<1x8x8xf32>
    %270 = vector.shape_cast %269 : vector<1x8x8xf32> to vector<8x8xf32>
    %271 = vector.extract_strided_slice %264 {offsets = [3, 0, 0], sizes = [1, 8, 8], strides = [1, 1, 1]} : vector<4x8x8xf32> to vector<1x8x8xf32>
    %272 = vector.shape_cast %271 : vector<1x8x8xf32> to vector<8x8xf32>
    %273 = tpu.concatenate %266, %268, %270, %272 in 1 : vector<8x8xf32>, vector<8x8xf32>, vector<8x8xf32>, vector<8x8xf32> -> vector<8x32xf32>
    %c1_87 = arith.constant 1 : index
    %c0_88 = arith.constant 0 : index
    %c0_89 = arith.constant 0 : index
    %274 = vector.load %arg10[%c1_87, %c0_88, %c0_89] : memref<2x32x32xf32, #tpu.memory_space<vmem>>, vector<1x32x32xf32>
    %275 = vector.shape_cast %274 : vector<1x32x32xf32> to vector<32x32xf32>
    %cst_90 = arith.constant dense<0.000000e+00> : vector<8x32xf32>
    %276 = tpu.matmul %273, %275, %cst_90 {dimension_numbers = #tpu.dot_dimension_numbers<[1], [0], [0], [1], [0, 0, 1, 1], [], []>} : vector<8x32xf32>, vector<32x32xf32>, vector<8x32xf32> -> vector<8x32xf32>
    %c1_91 = arith.constant 1 : index
    %c0_92 = arith.constant 0 : index
    %c0_93 = arith.constant 0 : index
    %277 = vector.load %arg11[%c1_91, %c0_92, %c0_93] : memref<2x1x32xf32, #tpu.memory_space<vmem>>, vector<1x1x32xf32>
    %278 = vector.shape_cast %277 : vector<1x1x32xf32> to vector<1x32xf32>
    %279 = vector.broadcast %278 : vector<1x32xf32> to vector<8x32xf32>
    %280 = arith.addf %276, %279 : vector<8x32xf32>
    %c1_94 = arith.constant 1 : index
    %c0_95 = arith.constant 0 : index
    %c0_96 = arith.constant 0 : index
    %281 = vector.load %arg12[%c1_94, %c0_95, %c0_96] : memref<2x2x32xf32, #tpu.memory_space<vmem>>, vector<1x2x32xf32>
    %282 = vector.shape_cast %281 : vector<1x2x32xf32> to vector<2x32xf32>
    %283 = arith.addf %280, %211 : vector<8x32xf32>
    %284 = vector.extract_strided_slice %282 {offsets = [0, 0], sizes = [1, 32], strides = [1, 1]} : vector<2x32xf32> to vector<1x32xf32>
    %285 = vector.extract_strided_slice %282 {offsets = [1, 0], sizes = [1, 32], strides = [1, 1]} : vector<2x32xf32> to vector<1x32xf32>
    %cst_97 = arith.constant dense<0.000000e+00> : vector<8xf32>
    %286 = vector.multi_reduction <add>, %283, %cst_97 [1] : vector<8x32xf32> to vector<8xf32>
    %287 = vector.shape_cast %286 : vector<8xf32> to vector<8x1xf32>
    %cst_98 = arith.constant 3.200000e+01 : f32
    %288 = vector.broadcast %cst_98 : f32 to vector<8x1xf32>
    %289 = arith.divf %287, %288 : vector<8x1xf32>
    %290 = vector.broadcast %289 : vector<8x1xf32> to vector<8x32xf32>
    %291 = arith.subf %283, %290 : vector<8x32xf32>
    %292 = arith.mulf %291, %291 : vector<8x32xf32>
    %cst_99 = arith.constant dense<0.000000e+00> : vector<8xf32>
    %293 = vector.multi_reduction <add>, %292, %cst_99 [1] : vector<8x32xf32> to vector<8xf32>
    %294 = vector.shape_cast %293 : vector<8xf32> to vector<8x1xf32>
    %cst_100 = arith.constant 3.200000e+01 : f32
    %295 = vector.broadcast %cst_100 : f32 to vector<8x1xf32>
    %296 = arith.divf %294, %295 : vector<8x1xf32>
    %cst_101 = arith.constant 9.99999996E-13 : f32
    %297 = vector.broadcast %cst_101 : f32 to vector<8x1xf32>
    %298 = arith.addf %296, %297 : vector<8x1xf32>
    %299 = math.rsqrt %298 : vector<8x1xf32>
    %300 = vector.broadcast %289 : vector<8x1xf32> to vector<8x32xf32>
    %301 = arith.subf %283, %300 : vector<8x32xf32>
    %302 = vector.broadcast %299 : vector<8x1xf32> to vector<8x32xf32>
    %303 = arith.mulf %301, %302 : vector<8x32xf32>
    %304 = vector.broadcast %284 : vector<1x32xf32> to vector<8x32xf32>
    %305 = arith.mulf %303, %304 : vector<8x32xf32>
    %306 = vector.broadcast %285 : vector<1x32xf32> to vector<8x32xf32>
    %307 = arith.addf %305, %306 : vector<8x32xf32>
    %c1_102 = arith.constant 1 : index
    %c0_103 = arith.constant 0 : index
    %c0_104 = arith.constant 0 : index
    %308 = vector.load %arg13[%c1_102, %c0_103, %c0_104] : memref<2x32x64xf32, #tpu.memory_space<vmem>>, vector<1x32x64xf32>
    %309 = vector.shape_cast %308 : vector<1x32x64xf32> to vector<32x64xf32>
    %cst_105 = arith.constant dense<0.000000e+00> : vector<8x64xf32>
    %310 = tpu.matmul %307, %309, %cst_105 {dimension_numbers = #tpu.dot_dimension_numbers<[1], [0], [0], [1], [0, 0, 1, 1], [], []>} : vector<8x32xf32>, vector<32x64xf32>, vector<8x64xf32> -> vector<8x64xf32>
    %c1_106 = arith.constant 1 : index
    %c0_107 = arith.constant 0 : index
    %c0_108 = arith.constant 0 : index
    %311 = vector.load %arg14[%c1_106, %c0_107, %c0_108] : memref<2x1x64xf32, #tpu.memory_space<vmem>>, vector<1x1x64xf32>
    %312 = vector.shape_cast %311 : vector<1x1x64xf32> to vector<1x64xf32>
    %313 = vector.broadcast %312 : vector<1x64xf32> to vector<8x64xf32>
    %314 = arith.addf %310, %313 : vector<8x64xf32>
    %315 = arith.mulf %314, %314 : vector<8x64xf32>
    %316 = arith.mulf %314, %315 : vector<8x64xf32>
    %cst_109 = arith.constant 4.471500e-02 : f32
    %317 = vector.broadcast %cst_109 : f32 to vector<8x64xf32>
    %318 = arith.mulf %317, %316 : vector<8x64xf32>
    %319 = arith.addf %314, %318 : vector<8x64xf32>
    %cst_110 = arith.constant 0.797884583 : f32
    %320 = vector.broadcast %cst_110 : f32 to vector<8x64xf32>
    %321 = arith.mulf %320, %319 : vector<8x64xf32>
    %322 = math.tanh %321 : vector<8x64xf32>
    %cst_111 = arith.constant 1.000000e+00 : f32
    %323 = vector.broadcast %cst_111 : f32 to vector<8x64xf32>
    %324 = arith.addf %323, %322 : vector<8x64xf32>
    %cst_112 = arith.constant 5.000000e-01 : f32
    %325 = vector.broadcast %cst_112 : f32 to vector<8x64xf32>
    %326 = arith.mulf %325, %324 : vector<8x64xf32>
    %327 = arith.mulf %314, %326 : vector<8x64xf32>
    %c1_113 = arith.constant 1 : index
    %c0_114 = arith.constant 0 : index
    %c0_115 = arith.constant 0 : index
    %328 = vector.load %arg15[%c1_113, %c0_114, %c0_115] : memref<2x64x32xf32, #tpu.memory_space<vmem>>, vector<1x64x32xf32>
    %329 = vector.shape_cast %328 : vector<1x64x32xf32> to vector<64x32xf32>
    %cst_116 = arith.constant dense<0.000000e+00> : vector<8x32xf32>
    %330 = tpu.matmul %327, %329, %cst_116 {dimension_numbers = #tpu.dot_dimension_numbers<[1], [0], [0], [1], [0, 0, 1, 1], [], []>} : vector<8x64xf32>, vector<64x32xf32>, vector<8x32xf32> -> vector<8x32xf32>
    %c1_117 = arith.constant 1 : index
    %c0_118 = arith.constant 0 : index
    %c0_119 = arith.constant 0 : index
    %331 = vector.load %arg16[%c1_117, %c0_118, %c0_119] : memref<2x1x32xf32, #tpu.memory_space<vmem>>, vector<1x1x32xf32>
    %332 = vector.shape_cast %331 : vector<1x1x32xf32> to vector<1x32xf32>
    %333 = vector.broadcast %332 : vector<1x32xf32> to vector<8x32xf32>
    %334 = arith.addf %330, %333 : vector<8x32xf32>
    %c1_120 = arith.constant 1 : index
    %c0_121 = arith.constant 0 : index
    %c0_122 = arith.constant 0 : index
    %335 = vector.load %arg17[%c1_120, %c0_121, %c0_122] : memref<2x2x32xf32, #tpu.memory_space<vmem>>, vector<1x2x32xf32>
    %336 = vector.shape_cast %335 : vector<1x2x32xf32> to vector<2x32xf32>
    %337 = arith.addf %334, %307 : vector<8x32xf32>
    %338 = vector.extract_strided_slice %336 {offsets = [0, 0], sizes = [1, 32], strides = [1, 1]} : vector<2x32xf32> to vector<1x32xf32>
    %339 = vector.extract_strided_slice %336 {offsets = [1, 0], sizes = [1, 32], strides = [1, 1]} : vector<2x32xf32> to vector<1x32xf32>
    %cst_123 = arith.constant dense<0.000000e+00> : vector<8xf32>
    %340 = vector.multi_reduction <add>, %337, %cst_123 [1] : vector<8x32xf32> to vector<8xf32>
    %341 = vector.shape_cast %340 : vector<8xf32> to vector<8x1xf32>
    %cst_124 = arith.constant 3.200000e+01 : f32
    %342 = vector.broadcast %cst_124 : f32 to vector<8x1xf32>
    %343 = arith.divf %341, %342 : vector<8x1xf32>
    %344 = vector.broadcast %343 : vector<8x1xf32> to vector<8x32xf32>
    %345 = arith.subf %337, %344 : vector<8x32xf32>
    %346 = arith.mulf %345, %345 : vector<8x32xf32>
    %cst_125 = arith.constant dense<0.000000e+00> : vector<8xf32>
    %347 = vector.multi_reduction <add>, %346, %cst_125 [1] : vector<8x32xf32> to vector<8xf32>
    %348 = vector.shape_cast %347 : vector<8xf32> to vector<8x1xf32>
    %cst_126 = arith.constant 3.200000e+01 : f32
    %349 = vector.broadcast %cst_126 : f32 to vector<8x1xf32>
    %350 = arith.divf %348, %349 : vector<8x1xf32>
    %cst_127 = arith.constant 9.99999996E-13 : f32
    %351 = vector.broadcast %cst_127 : f32 to vector<8x1xf32>
    %352 = arith.addf %350, %351 : vector<8x1xf32>
    %353 = math.rsqrt %352 : vector<8x1xf32>
    %354 = vector.broadcast %343 : vector<8x1xf32> to vector<8x32xf32>
    %355 = arith.subf %337, %354 : vector<8x32xf32>
    %356 = vector.broadcast %353 : vector<8x1xf32> to vector<8x32xf32>
    %357 = arith.mulf %355, %356 : vector<8x32xf32>
    %358 = vector.broadcast %338 : vector<1x32xf32> to vector<8x32xf32>
    %359 = arith.mulf %357, %358 : vector<8x32xf32>
    %360 = vector.broadcast %339 : vector<1x32xf32> to vector<8x32xf32>
    %361 = arith.addf %359, %360 : vector<8x32xf32>
    %c0_128 = arith.constant 0 : index
    %c0_129 = arith.constant 0 : index
    %362 = vector.load %arg18[%c0_128, %c0_129] : memref<32x4xf32, #tpu.memory_space<vmem>>, vector<32x4xf32>
    %cst_130 = arith.constant dense<0.000000e+00> : vector<8x4xf32>
    %363 = tpu.matmul %361, %362, %cst_130 {dimension_numbers = #tpu.dot_dimension_numbers<[1], [0], [0], [1], [0, 0, 1, 1], [], []>} : vector<8x32xf32>, vector<32x4xf32>, vector<8x4xf32> -> vector<8x4xf32>
    %c0_131 = arith.constant 0 : index
    %c0_132 = arith.constant 0 : index
    %364 = vector.load %arg19[%c0_131, %c0_132] : memref<1x4xf32, #tpu.memory_space<vmem>>, vector<1x4xf32>
    %365 = vector.broadcast %364 : vector<1x4xf32> to vector<8x4xf32>
    %366 = arith.addf %363, %365 : vector<8x4xf32>
    %c0_133 = arith.constant 0 : index
    %c0_134 = arith.constant 0 : index
    %367 = vector.load %arg22[%c0_133, %c0_134] : memref<8x4xf32, #tpu.memory_space<vmem>>, vector<8x4xf32>
    tpu.vector_store %arg22[%c0_133, %c0_134], %366 {strides = array<i32>} : memref<8x4xf32, #tpu.memory_space<vmem>>, vector<8x4xf32>,
    %368 = vector.extract_strided_slice %361 {offsets = [0, 0], sizes = [1, 32], strides = [1, 1]} : vector<8x32xf32> to vector<1x32xf32>
    %c0_135 = arith.constant 0 : index
    %c0_136 = arith.constant 0 : index
    %369 = vector.load %arg20[%c0_135, %c0_136] : memref<32x3xf32, #tpu.memory_space<vmem>>, vector<32x3xf32>
    %cst_137 = arith.constant dense<0.000000e+00> : vector<1x3xf32>
    %370 = tpu.matmul %368, %369, %cst_137 {dimension_numbers = #tpu.dot_dimension_numbers<[1], [0], [0], [1], [0, 0, 1, 1], [], []>} : vector<1x32xf32>, vector<32x3xf32>, vector<1x3xf32> -> vector<1x3xf32>
    %c0_138 = arith.constant 0 : index
    %c0_139 = arith.constant 0 : index
    %371 = vector.load %arg21[%c0_138, %c0_139] : memref<1x3xf32, #tpu.memory_space<vmem>>, vector<1x3xf32>
    %372 = arith.addf %370, %371 : vector<1x3xf32>
    %373 = vector.shape_cast %372 : vector<1x3xf32> to vector<1x1x3xf32>
    %c0_140 = arith.constant 0 : index
    %c0_141 = arith.constant 0 : index
    %c0_142 = arith.constant 0 : index
    %374 = vector.load %arg23[%c0_140, %c0_141, %c0_142] : memref<1x1x3xf32, #tpu.memory_space<vmem>>, vector<1x1x3xf32>
    tpu.vector_store %arg23[%c0_140, %c0_141, %c0_142], %373 {strides = array<i32>} : memref<1x1x3xf32, #tpu.memory_space<vmem>>, vector<1x1x3xf32>,
    return
  }
  func.func @transform_0(%arg0: i32) -> (i32, i32) {
    %c0_i32 = arith.constant 0 : i32
    %c0_i32_0 = arith.constant 0 : i32
    return %arg0, %c0_i32 : i32, i32
  }
  func.func @transform_1(%arg0: i32) -> (i32, i32) {
    %c0_i32 = arith.constant 0 : i32
    %c0_i32_0 = arith.constant 0 : i32
    return %arg0, %c0_i32 : i32, i32
  }
  func.func @transform_2(%arg0: i32) -> (i32, i32, i32) {
    %c0_i32 = arith.constant 0 : i32
    %c0_i32_0 = arith.constant 0 : i32
    %c0_i32_1 = arith.constant 0 : i32
    return %arg0, %c0_i32, %c0_i32_0 : i32, i32, i32
  }
  func.func @transform_3(%arg0: i32) -> (i32, i32) {
    %c0_i32 = arith.constant 0 : i32
    %c0_i32_0 = arith.constant 0 : i32
    %c0_i32_1 = arith.constant 0 : i32
    return %c0_i32, %c0_i32_0 : i32, i32
  }
  func.func @transform_4(%arg0: i32) -> (i32, i32) {
    %c0_i32 = arith.constant 0 : i32
    %c0_i32_0 = arith.constant 0 : i32
    %c0_i32_1 = arith.constant 0 : i32
    return %c0_i32, %c0_i32_0 : i32, i32
  }
  func.func @transform_5(%arg0: i32) -> (i32, i32) {
    %c0_i32 = arith.constant 0 : i32
    %c0_i32_0 = arith.constant 0 : i32
    %c0_i32_1 = arith.constant 0 : i32
    return %c0_i32, %c0_i32_0 : i32, i32
  }
  func.func @transform_6(%arg0: i32) -> (i32, i32) {
    %c0_i32 = arith.constant 0 : i32
    %c0_i32_0 = arith.constant 0 : i32
    %c0_i32_1 = arith.constant 0 : i32
    return %c0_i32, %c0_i32_0 : i32, i32
  }
  func.func @transform_7(%arg0: i32) -> (i32, i32, i32) {
    %c0_i32 = arith.constant 0 : i32
    %c0_i32_0 = arith.constant 0 : i32
    %c0_i32_1 = arith.constant 0 : i32
    %c0_i32_2 = arith.constant 0 : i32
    return %c0_i32, %c0_i32_0, %c0_i32_1 : i32, i32, i32
  }
  func.func @transform_8(%arg0: i32) -> (i32, i32, i32) {
    %c0_i32 = arith.constant 0 : i32
    %c0_i32_0 = arith.constant 0 : i32
    %c0_i32_1 = arith.constant 0 : i32
    %c0_i32_2 = arith.constant 0 : i32
    return %c0_i32, %c0_i32_0, %c0_i32_1 : i32, i32, i32
  }
  func.func @transform_9(%arg0: i32) -> (i32, i32, i32) {
    %c0_i32 = arith.constant 0 : i32
    %c0_i32_0 = arith.constant 0 : i32
    %c0_i32_1 = arith.constant 0 : i32
    %c0_i32_2 = arith.constant 0 : i32
    return %c0_i32, %c0_i32_0, %c0_i32_1 : i32, i32, i32
  }
  func.func @transform_10(%arg0: i32) -> (i32, i32, i32) {
    %c0_i32 = arith.constant 0 : i32
    %c0_i32_0 = arith.constant 0 : i32
    %c0_i32_1 = arith.constant 0 : i32
    %c0_i32_2 = arith.constant 0 : i32
    return %c0_i32, %c0_i32_0, %c0_i32_1 : i32, i32, i32
  }
  func.func @transform_11(%arg0: i32) -> (i32, i32, i32) {
    %c0_i32 = arith.constant 0 : i32
    %c0_i32_0 = arith.constant 0 : i32
    %c0_i32_1 = arith.constant 0 : i32
    %c0_i32_2 = arith.constant 0 : i32
    return %c0_i32, %c0_i32_0, %c0_i32_1 : i32, i32, i32
  }
  func.func @transform_12(%arg0: i32) -> (i32, i32, i32) {
    %c0_i32 = arith.constant 0 : i32
    %c0_i32_0 = arith.constant 0 : i32
    %c0_i32_1 = arith.constant 0 : i32
    %c0_i32_2 = arith.constant 0 : i32
    return %c0_i32, %c0_i32_0, %c0_i32_1 : i32, i32, i32
  }
  func.func @transform_13(%arg0: i32) -> (i32, i32, i32) {
    %c0_i32 = arith.constant 0 : i32
    %c0_i32_0 = arith.constant 0 : i32
    %c0_i32_1 = arith.constant 0 : i32
    %c0_i32_2 = arith.constant 0 : i32
    return %c0_i32, %c0_i32_0, %c0_i32_1 : i32, i32, i32
  }
  func.func @transform_14(%arg0: i32) -> (i32, i32, i32) {
    %c0_i32 = arith.constant 0 : i32
    %c0_i32_0 = arith.constant 0 : i32
    %c0_i32_1 = arith.constant 0 : i32
    %c0_i32_2 = arith.constant 0 : i32
    return %c0_i32, %c0_i32_0, %c0_i32_1 : i32, i32, i32
  }
  func.func @transform_15(%arg0: i32) -> (i32, i32, i32) {
    %c0_i32 = arith.constant 0 : i32
    %c0_i32_0 = arith.constant 0 : i32
    %c0_i32_1 = arith.constant 0 : i32
    %c0_i32_2 = arith.constant 0 : i32
    return %c0_i32, %c0_i32_0, %c0_i32_1 : i32, i32, i32
  }
  func.func @transform_16(%arg0: i32) -> (i32, i32, i32) {
    %c0_i32 = arith.constant 0 : i32
    %c0_i32_0 = arith.constant 0 : i32
    %c0_i32_1 = arith.constant 0 : i32
    %c0_i32_2 = arith.constant 0 : i32
    return %c0_i32, %c0_i32_0, %c0_i32_1 : i32, i32, i32
  }
  func.func @transform_17(%arg0: i32) -> (i32, i32) {
    %c0_i32 = arith.constant 0 : i32
    %c0_i32_0 = arith.constant 0 : i32
    %c0_i32_1 = arith.constant 0 : i32
    return %c0_i32, %c0_i32_0 : i32, i32
  }
  func.func @transform_18(%arg0: i32) -> (i32, i32) {
    %c0_i32 = arith.constant 0 : i32
    %c0_i32_0 = arith.constant 0 : i32
    %c0_i32_1 = arith.constant 0 : i32
    return %c0_i32, %c0_i32_0 : i32, i32
  }
  func.func @transform_19(%arg0: i32) -> (i32, i32) {
    %c0_i32 = arith.constant 0 : i32
    %c0_i32_0 = arith.constant 0 : i32
    %c0_i32_1 = arith.constant 0 : i32
    return %c0_i32, %c0_i32_0 : i32, i32
  }
  func.func @transform_20(%arg0: i32) -> (i32, i32) {
    %c0_i32 = arith.constant 0 : i32
    %c0_i32_0 = arith.constant 0 : i32
    %c0_i32_1 = arith.constant 0 : i32
    return %c0_i32, %c0_i32_0 : i32, i32
  }
  func.func @transform_21(%arg0: i32) -> (i32, i32) {
    %c0_i32 = arith.constant 0 : i32
    %c0_i32_0 = arith.constant 0 : i32
    return %arg0, %c0_i32 : i32, i32
  }
  func.func @transform_22(%arg0: i32) -> (i32, i32, i32) {
    %c0_i32 = arith.constant 0 : i32
    %c0_i32_0 = arith.constant 0 : i32
    %c0_i32_1 = arith.constant 0 : i32
    return %arg0, %c0_i32, %c0_i32_0 : i32, i32, i32
  }
}

</mosaic_0001>

<llo_original>
// kernel: run.1
$region0: #{run.1}
  #allocation0 [shape = 'u32[]', space=smem, size = 0x4, offset = 0x4, fixed_abs, tag = 'smem constant byte address 0x4 - core index']
  #allocation1 [shape = 'u32[72,128]{1,0:T(1,128)}', space=vmem, size = 0x9000, scoped, tag = 'internal scratch']
  %s0 = inlined_call_operand.vmem [shape: s32[16,1], index: 0, kind: input, shape index: {}]
  %s1 = inlined_call_operand.vmem [shape: f32[16,1], index: 1, kind: input, shape index: {}]
  %s2 = inlined_call_operand.vmem [shape: f32[2,1,8], index: 2, kind: input, shape index: {}]
  %s3 = inlined_call_operand.vmem [shape: f32[64,32], index: 3, kind: input, shape index: {}]
  %s4 = inlined_call_operand.vmem [shape: f32[16,32], index: 4, kind: input, shape index: {}]
  %s5 = inlined_call_operand.vmem [shape: f32[2,32], index: 5, kind: input, shape index: {}]
  %s6 = inlined_call_operand.vmem [shape: f32[2,32], index: 6, kind: input, shape index: {}]
  %s7 = inlined_call_operand.vmem [shape: f32[2,32,96], index: 7, kind: input, shape index: {}]
  %s8 = inlined_call_operand.vmem [shape: f32[2,1,96], index: 8, kind: input, shape index: {}]
  %s9 = inlined_call_operand.vmem [shape: f32[2,32,32], index: 9, kind: input, shape index: {}]
  %s10 = inlined_call_operand.vmem [shape: f32[2,1,32], index: 10, kind: input, shape index: {}]
  %s11 = inlined_call_operand.vmem [shape: f32[2,2,32], index: 11, kind: input, shape index: {}]
  %s12 = inlined_call_operand.vmem [shape: f32[2,32,64], index: 12, kind: input, shape index: {}]
  %s13 = inlined_call_operand.vmem [shape: f32[2,1,64], index: 13, kind: input, shape index: {}]
  %s14 = inlined_call_operand.vmem [shape: f32[2,64,32], index: 14, kind: input, shape index: {}]
  %s15 = inlined_call_operand.vmem [shape: f32[2,1,32], index: 15, kind: input, shape index: {}]
  %s16 = inlined_call_operand.vmem [shape: f32[2,2,32], index: 16, kind: input, shape index: {}]
  %s17 = inlined_call_operand.vmem [shape: f32[32,4], index: 17, kind: input, shape index: {}]
  %s18 = inlined_call_operand.vmem [shape: f32[1,4], index: 18, kind: input, shape index: {}]
  %s19 = inlined_call_operand.vmem [shape: f32[32,3], index: 19, kind: input, shape index: {}]
  %s20 = inlined_call_operand.vmem [shape: f32[1,3], index: 20, kind: input, shape index: {}]
  %s21 = inlined_call_operand.vmem [shape: f32[16,4], index: 21, kind: output, shape index: {0}]
  %s22 = inlined_call_operand.hbm [shape: f32[2,1,3], index: 22, kind: output, shape index: {1}]
  %23 = xla_tuple %s21, %s22
  %s24 = sld [smem:[#allocation0]]
  $region125: #{run.1} parent=0
    _
  %s26 = ssub.s32 1, %s24
  %s27 = scalar_select 0, %s26, %s24
  $region1: #{run.1} parent=0
    #allocation2 [shape = 'u8[1024]{0}', space=vmem, size = 0x400, scoped, tag = 'output window, operand 1']
    #allocation3 [shape = 's32[2]{0}', space=sflag, size = 0x8, scoped, tag = 'scoped memory for run.1']
    %28 = vsyncpa [#allocation3], 0
    %s29 = scalar_lea.sflag [#allocation3], 1
    %30 = vsyncpa %s29, 0
    loop: start=0, step=1, limit=4
    $region2: #{run.1} parent=1 // loop_pre_header
      _
    $region3: #{run.1} parent=1 // loop_header
      %s32 = sphi 0, %s36
      %p33 = scmp.ge.s32.totalorder %s32, 4
      %s42 = sphi 0, %s44
      %s45 = sphi 0, %s42
      %s46 = sphi 0, %s45
      %s62 = sphi 0, %s46
      %s68 = sphi 0, %s70
      %s71 = sphi 0, %s68
      %s72 = sphi 0, %s71
      %s88 = sphi 0, %s72
      %s94 = sphi 0, %s96
      %s97 = sphi 0, %s94
      %s98 = sphi 0, %s97
      %s114 = sphi 0, %s98
      %s118 = sphi 0, %s118
      %s120 = sphi 0, %s118
      %s121 = sphi 0, %s120
      %s135 = sphi 0, %s121
      %s139 = sphi 0, %s139
      %s141 = sphi 0, %s139
      %s142 = sphi 0, %s141
      %s156 = sphi 0, %s142
      %s160 = sphi 0, %s160
      %s162 = sphi 0, %s160
      %s163 = sphi 0, %s162
      %s177 = sphi 0, %s163
      %s181 = sphi 0, %s181
      %s183 = sphi 0, %s181
      %s184 = sphi 0, %s183
      %s198 = sphi 0, %s184
      %s202 = sphi 0, %s202
      %s204 = sphi 0, %s202
      %s205 = sphi 0, %s204
      %s219 = sphi 0, %s205
      %s223 = sphi 0, %s223
      %s225 = sphi 0, %s223
      %s226 = sphi 0, %s225
      %s240 = sphi 0, %s226
      %s244 = sphi 0, %s244
      %s246 = sphi 0, %s244
      %s247 = sphi 0, %s246
      %s261 = sphi 0, %s247
      %s265 = sphi 0, %s265
      %s267 = sphi 0, %s265
      %s268 = sphi 0, %s267
      %s282 = sphi 0, %s268
      %s286 = sphi 0, %s286
      %s288 = sphi 0, %s286
      %s289 = sphi 0, %s288
      %s303 = sphi 0, %s289
      %s307 = sphi 0, %s307
      %s309 = sphi 0, %s307
      %s310 = sphi 0, %s309
      %s324 = sphi 0, %s310
      %s328 = sphi 0, %s328
      %s330 = sphi 0, %s328
      %s331 = sphi 0, %s330
      %s345 = sphi 0, %s331
      %s349 = sphi 0, %s349
      %s351 = sphi 0, %s349
      %s352 = sphi 0, %s351
      %s366 = sphi 0, %s352
      %s370 = sphi 0, %s370
      %s372 = sphi 0, %s370
      %s373 = sphi 0, %s372
      %s387 = sphi 0, %s373
      %s391 = sphi 0, %s391
      %s393 = sphi 0, %s391
      %s394 = sphi 0, %s393
      %s408 = sphi 0, %s394
      %s412 = sphi 0, %s412
      %s414 = sphi 0, %s412
      %s415 = sphi 0, %s414
      %s429 = sphi 0, %s415
      %s433 = sphi 0, %s433
      %s435 = sphi 0, %s433
      %s436 = sphi 0, %s435
      %s450 = sphi 0, %s436
      %s454 = sphi 0, %s454
      %s456 = sphi 0, %s454
      %s457 = sphi 0, %s456
      %s471 = sphi 0, %s457
      %s475 = sphi 0, %s475
      %s477 = sphi 0, %s475
      %s478 = sphi 0, %s477
      %s492 = sphi 0, %s478
      %s498 = sphi 0, %s500
      %s501 = sphi 0, %s498
      %s502 = sphi 0, %s501
      %s518 = sphi 0, %s502
      %s524 = sphi 0, %s526
      %s527 = sphi 0, %s524
      %s528 = sphi 0, %s527
      %s544 = sphi 0, %s528
    $region4: #{run.1} parent=1 // loop_header_branch
      %35 = sbr.rel (%p33) target = $region8
    $region5: #{run.1} parent=1 // loop_body
      %s37 = ssub.s32 %s32, 1
      %s38 = ssub.s32 %s32, 2
      %s39 = sadd.s32 %s32, 1
      %s40 = ssub.s32 %s32, %s39
      %p41 = scmp.eq.s32.totalorder %s40, 0
      %s43 = sadd.s32 %s42, 1
      %s44 = scalar_select %p41, %s42, %s43
      %p47 = pneg %p41
      %p48 = scmp.eq.s32.totalorder %s32, 1
      %p49 = por %p47, %p48
      %p50 = scmp.ne.s32.totalorder %s42, %s45
      %p51 = scmp.eq.s32.totalorder %s32, 0
      %p52 = por %p50, %p51
      %p53 = scmp.ne.s32.totalorder %s42, %s45
      %p54 = scmp.eq.s32.totalorder %s37, 1
      %p55 = por %p53, %p54
      %p56 = scmp.ne.s32.totalorder %s45, %s46
      %p57 = scmp.eq.s32.totalorder %s37, 0
      %p58 = por %p56, %p57
      %p59 = scmp.ne.s32.totalorder %s45, %s46
      %p60 = scmp.eq.s32.totalorder %s38, 1
      %p61 = por %p59, %p60
      %p63 = scmp.ne.s32.totalorder %s46, %s62
      %p64 = scmp.eq.s32.totalorder %s38, 0
      %p65 = por %p63, %p64
      %s66 = ssub.s32 %s32, %s39
      %p67 = scmp.eq.s32.totalorder %s66, 0
      %s69 = sadd.s32 %s68, 1
      %s70 = scalar_select %p67, %s68, %s69
      %p73 = pneg %p67
      %p74 = scmp.eq.s32.totalorder %s32, 1
      %p75 = por %p73, %p74
      %p76 = scmp.ne.s32.totalorder %s68, %s71
      %p77 = scmp.eq.s32.totalorder %s32, 0
      %p78 = por %p76, %p77
      %p79 = scmp.ne.s32.totalorder %s68, %s71
      %p80 = scmp.eq.s32.totalorder %s37, 1
      %p81 = por %p79, %p80
      %p82 = scmp.ne.s32.totalorder %s71, %s72
      %p83 = scmp.eq.s32.totalorder %s37, 0
      %p84 = por %p82, %p83
      %p85 = scmp.ne.s32.totalorder %s71, %s72
      %p86 = scmp.eq.s32.totalorder %s38, 1
      %p87 = por %p85, %p86
      %p89 = scmp.ne.s32.totalorder %s72, %s88
      %p90 = scmp.eq.s32.totalorder %s38, 0
      %p91 = por %p89, %p90
      %s92 = ssub.s32 %s32, %s39
      %p93 = scmp.eq.s32.totalorder %s92, 0
      %s95 = sadd.s32 %s94, 1
      %s96 = scalar_select %p93, %s94, %s95
      %p99 = pneg %p93
      %p100 = scmp.eq.s32.totalorder %s32, 1
      %p101 = por %p99, %p100
      %p102 = scmp.ne.s32.totalorder %s94, %s97
      %p103 = scmp.eq.s32.totalorder %s32, 0
      %p104 = por %p102, %p103
      %p105 = scmp.ne.s32.totalorder %s94, %s97
      %p106 = scmp.eq.s32.totalorder %s37, 1
      %p107 = por %p105, %p106
      %p108 = scmp.ne.s32.totalorder %s97, %s98
      %p109 = scmp.eq.s32.totalorder %s37, 0
      %p110 = por %p108, %p109
      %p111 = scmp.ne.s32.totalorder %s97, %s98
      %p112 = scmp.eq.s32.totalorder %s38, 1
      %p113 = por %p111, %p112
      %p115 = scmp.ne.s32.totalorder %s98, %s114
      %p116 = scmp.eq.s32.totalorder %s38, 0
      %p117 = por %p115, %p116
      %s119 = sadd.s32 %s118, 1
      %p122 = scmp.eq.s32.totalorder %s32, 1
      %p123 = scmp.ne.s32.totalorder %s118, %s120
      %p124 = scmp.eq.s32.totalorder %s32, 0
      %p125 = por %p123, %p124
      %p126 = scmp.ne.s32.totalorder %s118, %s120
      %p127 = scmp.eq.s32.totalorder %s37, 1
      %p128 = por %p126, %p127
      %p129 = scmp.ne.s32.totalorder %s120, %s121
      %p130 = scmp.eq.s32.totalorder %s37, 0
      %p131 = por %p129, %p130
      %p132 = scmp.ne.s32.totalorder %s120, %s121
      %p133 = scmp.eq.s32.totalorder %s38, 1
      %p134 = por %p132, %p133
      %p136 = scmp.ne.s32.totalorder %s121, %s135
      %p137 = scmp.eq.s32.totalorder %s38, 0
      %p138 = por %p136, %p137
      %s140 = sadd.s32 %s139, 1
      %p143 = scmp.eq.s32.totalorder %s32, 1
      %p144 = scmp.ne.s32.totalorder %s139, %s141
      %p145 = scmp.eq.s32.totalorder %s32, 0
      %p146 = por %p144, %p145
      %p147 = scmp.ne.s32.totalorder %s139, %s141
      %p148 = scmp.eq.s32.totalorder %s37, 1
      %p149 = por %p147, %p148
      %p150 = scmp.ne.s32.totalorder %s141, %s142
      %p151 = scmp.eq.s32.totalorder %s37, 0
      %p152 = por %p150, %p151
      %p153 = scmp.ne.s32.totalorder %s141, %s142
      %p154 = scmp.eq.s32.totalorder %s38, 1
      %p155 = por %p153, %p154
      %p157 = scmp.ne.s32.totalorder %s142, %s156
      %p158 = scmp.eq.s32.totalorder %s38, 0
      %p159 = por %p157, %p158
      %s161 = sadd.s32 %s160, 1
      %p164 = scmp.eq.s32.totalorder %s32, 1
      %p165 = scmp.ne.s32.totalorder %s160, %s162
      %p166 = scmp.eq.s32.totalorder %s32, 0
      %p167 = por %p165, %p166
      %p168 = scmp.ne.s32.totalorder %s160, %s162
      %p169 = scmp.eq.s32.totalorder %s37, 1
      %p170 = por %p168, %p169
      %p171 = scmp.ne.s32.totalorder %s162, %s163
      %p172 = scmp.eq.s32.totalorder %s37, 0
      %p173 = por %p171, %p172
      %p174 = scmp.ne.s32.totalorder %s162, %s163
      %p175 = scmp.eq.s32.totalorder %s38, 1
      %p176 = por %p174, %p175
      %p178 = scmp.ne.s32.totalorder %s163, %s177
      %p179 = scmp.eq.s32.totalorder %s38, 0
      %p180 = por %p178, %p179
      %s182 = sadd.s32 %s181, 1
      %p185 = scmp.eq.s32.totalorder %s32, 1
      %p186 = scmp.ne.s32.totalorder %s181, %s183
      %p187 = scmp.eq.s32.totalorder %s32, 0
      %p188 = por %p186, %p187
      %p189 = scmp.ne.s32.totalorder %s181, %s183
      %p190 = scmp.eq.s32.totalorder %s37, 1
      %p191 = por %p189, %p190
      %p192 = scmp.ne.s32.totalorder %s183, %s184
      %p193 = scmp.eq.s32.totalorder %s37, 0
      %p194 = por %p192, %p193
      %p195 = scmp.ne.s32.totalorder %s183, %s184
      %p196 = scmp.eq.s32.totalorder %s38, 1
      %p197 = por %p195, %p196
      %p199 = scmp.ne.s32.totalorder %s184, %s198
      %p200 = scmp.eq.s32.totalorder %s38, 0
      %p201 = por %p199, %p200
      %s203 = sadd.s32 %s202, 1
      %p206 = scmp.eq.s32.totalorder %s32, 1
      %p207 = scmp.ne.s32.totalorder %s202, %s204
      %p208 = scmp.eq.s32.totalorder %s32, 0
      %p209 = por %p207, %p208
      %p210 = scmp.ne.s32.totalorder %s202, %s204
      %p211 = scmp.eq.s32.totalorder %s37, 1
      %p212 = por %p210, %p211
      %p213 = scmp.ne.s32.totalorder %s204, %s205
      %p214 = scmp.eq.s32.totalorder %s37, 0
      %p215 = por %p213, %p214
      %p216 = scmp.ne.s32.totalorder %s204, %s205
      %p217 = scmp.eq.s32.totalorder %s38, 1
      %p218 = por %p216, %p217
      %p220 = scmp.ne.s32.totalorder %s205, %s219
      %p221 = scmp.eq.s32.totalorder %s38, 0
      %p222 = por %p220, %p221
      %s224 = sadd.s32 %s223, 1
      %p227 = scmp.eq.s32.totalorder %s32, 1
      %p228 = scmp.ne.s32.totalorder %s223, %s225
      %p229 = scmp.eq.s32.totalorder %s32, 0
      %p230 = por %p228, %p229
      %p231 = scmp.ne.s32.totalorder %s223, %s225
      %p232 = scmp.eq.s32.totalorder %s37, 1
      %p233 = por %p231, %p232
      %p234 = scmp.ne.s32.totalorder %s225, %s226
      %p235 = scmp.eq.s32.totalorder %s37, 0
      %p236 = por %p234, %p235
      %p237 = scmp.ne.s32.totalorder %s225, %s226
      %p238 = scmp.eq.s32.totalorder %s38, 1
      %p239 = por %p237, %p238
      %p241 = scmp.ne.s32.totalorder %s226, %s240
      %p242 = scmp.eq.s32.totalorder %s38, 0
      %p243 = por %p241, %p242
      %s245 = sadd.s32 %s244, 1
      %p248 = scmp.eq.s32.totalorder %s32, 1
      %p249 = scmp.ne.s32.totalorder %s244, %s246
      %p250 = scmp.eq.s32.totalorder %s32, 0
      %p251 = por %p249, %p250
      %p252 = scmp.ne.s32.totalorder %s244, %s246
      %p253 = scmp.eq.s32.totalorder %s37, 1
      %p254 = por %p252, %p253
      %p255 = scmp.ne.s32.totalorder %s246, %s247
      %p256 = scmp.eq.s32.totalorder %s37, 0
      %p257 = por %p255, %p256
      %p258 = scmp.ne.s32.totalorder %s246, %s247
      %p259 = scmp.eq.s32.totalorder %s38, 1
      %p260 = por %p258, %p259
      %p262 = scmp.ne.s32.totalorder %s247, %s261
      %p263 = scmp.eq.s32.totalorder %s38, 0
      %p264 = por %p262, %p263
      %s266 = sadd.s32 %s265, 1
      %p269 = scmp.eq.s32.totalorder %s32, 1
      %p270 = scmp.ne.s32.totalorder %s265, %s267
      %p271 = scmp.eq.s32.totalorder %s32, 0
      %p272 = por %p270, %p271
      %p273 = scmp.ne.s32.totalorder %s265, %s267
      %p274 = scmp.eq.s32.totalorder %s37, 1
      %p275 = por %p273, %p274
      %p276 = scmp.ne.s32.totalorder %s267, %s268
      %p277 = scmp.eq.s32.totalorder %s37, 0
      %p278 = por %p276, %p277
      %p279 = scmp.ne.s32.totalorder %s267, %s268
      %p280 = scmp.eq.s32.totalorder %s38, 1
      %p281 = por %p279, %p280
      %p283 = scmp.ne.s32.totalorder %s268, %s282
      %p284 = scmp.eq.s32.totalorder %s38, 0
      %p285 = por %p283, %p284
      %s287 = sadd.s32 %s286, 1
      %p290 = scmp.eq.s32.totalorder %s32, 1
      %p291 = scmp.ne.s32.totalorder %s286, %s288
      %p292 = scmp.eq.s32.totalorder %s32, 0
      %p293 = por %p291, %p292
      %p294 = scmp.ne.s32.totalorder %s286, %s288
      %p295 = scmp.eq.s32.totalorder %s37, 1
      %p296 = por %p294, %p295
      %p297 = scmp.ne.s32.totalorder %s288, %s289
      %p298 = scmp.eq.s32.totalorder %s37, 0
      %p299 = por %p297, %p298
      %p300 = scmp.ne.s32.totalorder %s288, %s289
      %p301 = scmp.eq.s32.totalorder %s38, 1
      %p302 = por %p300, %p301
      %p304 = scmp.ne.s32.totalorder %s289, %s303
      %p305 = scmp.eq.s32.totalorder %s38, 0
      %p306 = por %p304, %p305
      %s308 = sadd.s32 %s307, 1
      %p311 = scmp.eq.s32.totalorder %s32, 1
      %p312 = scmp.ne.s32.totalorder %s307, %s309
      %p313 = scmp.eq.s32.totalorder %s32, 0
      %p314 = por %p312, %p313
      %p315 = scmp.ne.s32.totalorder %s307, %s309
      %p316 = scmp.eq.s32.totalorder %s37, 1
      %p317 = por %p315, %p316
      %p318 = scmp.ne.s32.totalorder %s309, %s310
      %p319 = scmp.eq.s32.totalorder %s37, 0
      %p320 = por %p318, %p319
      %p321 = scmp.ne.s32.totalorder %s309, %s310
      %p322 = scmp.eq.s32.totalorder %s38, 1
      %p323 = por %p321, %p322
      %p325 = scmp.ne.s32.totalorder %s310, %s324
      %p326 = scmp.eq.s32.totalorder %s38, 0
      %p327 = por %p325, %p326
      %s329 = sadd.s32 %s328, 1
      %p332 = scmp.eq.s32.totalorder %s32, 1
      %p333 = scmp.ne.s32.totalorder %s328, %s330
      %p334 = scmp.eq.s32.totalorder %s32, 0
      %p335 = por %p333, %p334
      %p336 = scmp.ne.s32.totalorder %s328, %s330
      %p337 = scmp.eq.s32.totalorder %s37, 1
      %p338 = por %p336, %p337
      %p339 = scmp.ne.s32.totalorder %s330, %s331
      %p340 = scmp.eq.s32.totalorder %s37, 0
      %p341 = por %p339, %p340
      %p342 = scmp.ne.s32.totalorder %s330, %s331
      %p343 = scmp.eq.s32.totalorder %s38, 1
      %p344 = por %p342, %p343
      %p346 = scmp.ne.s32.totalorder %s331, %s345
      %p347 = scmp.eq.s32.totalorder %s38, 0
      %p348 = por %p346, %p347
      %s350 = sadd.s32 %s349, 1
      %p353 = scmp.eq.s32.totalorder %s32, 1
      %p354 = scmp.ne.s32.totalorder %s349, %s351
      %p355 = scmp.eq.s32.totalorder %s32, 0
      %p356 = por %p354, %p355
      %p357 = scmp.ne.s32.totalorder %s349, %s351
      %p358 = scmp.eq.s32.totalorder %s37, 1
      %p359 = por %p357, %p358
      %p360 = scmp.ne.s32.totalorder %s351, %s352
      %p361 = scmp.eq.s32.totalorder %s37, 0
      %p362 = por %p360, %p361
      %p363 = scmp.ne.s32.totalorder %s351, %s352
      %p364 = scmp.eq.s32.totalorder %s38, 1
      %p365 = por %p363, %p364
      %p367 = scmp.ne.s32.totalorder %s352, %s366
      %p368 = scmp.eq.s32.totalorder %s38, 0
      %p369 = por %p367, %p368
      %s371 = sadd.s32 %s370, 1
      %p374 = scmp.eq.s32.totalorder %s32, 1
      %p375 = scmp.ne.s32.totalorder %s370, %s372
      %p376 = scmp.eq.s32.totalorder %s32, 0
      %p377 = por %p375, %p376
      %p378 = scmp.ne.s32.totalorder %s370, %s372
      %p379 = scmp.eq.s32.totalorder %s37, 1
      %p380 = por %p378, %p379
      %p381 = scmp.ne.s32.totalorder %s372, %s373
      %p382 = scmp.eq.s32.totalorder %s37, 0
      %p383 = por %p381, %p382
      %p384 = scmp.ne.s32.totalorder %s372, %s373
      %p385 = scmp.eq.s32.totalorder %s38, 1
      %p386 = por %p384, %p385
      %p388 = scmp.ne.s32.totalorder %s373, %s387
      %p389 = scmp.eq.s32.totalorder %s38, 0
      %p390 = por %p388, %p389
      %s392 = sadd.s32 %s391, 1
      %p395 = scmp.eq.s32.totalorder %s32, 1
      %p396 = scmp.ne.s32.totalorder %s391, %s393
      %p397 = scmp.eq.s32.totalorder %s32, 0
      %p398 = por %p396, %p397
      %p399 = scmp.ne.s32.totalorder %s391, %s393
      %p400 = scmp.eq.s32.totalorder %s37, 1
      %p401 = por %p399, %p400
      %p402 = scmp.ne.s32.totalorder %s393, %s394
      %p403 = scmp.eq.s32.totalorder %s37, 0
      %p404 = por %p402, %p403
      %p405 = scmp.ne.s32.totalorder %s393, %s394
      %p406 = scmp.eq.s32.totalorder %s38, 1
      %p407 = por %p405, %p406
      %p409 = scmp.ne.s32.totalorder %s394, %s408
      %p410 = scmp.eq.s32.totalorder %s38, 0
      %p411 = por %p409, %p410
      %s413 = sadd.s32 %s412, 1
      %p416 = scmp.eq.s32.totalorder %s32, 1
      %p417 = scmp.ne.s32.totalorder %s412, %s414
      %p418 = scmp.eq.s32.totalorder %s32, 0
      %p419 = por %p417, %p418
      %p420 = scmp.ne.s32.totalorder %s412, %s414
      %p421 = scmp.eq.s32.totalorder %s37, 1
      %p422 = por %p420, %p421
      %p423 = scmp.ne.s32.totalorder %s414, %s415
      %p424 = scmp.eq.s32.totalorder %s37, 0
      %p425 = por %p423, %p424
      %p426 = scmp.ne.s32.totalorder %s414, %s415
      %p427 = scmp.eq.s32.totalorder %s38, 1
      %p428 = por %p426, %p427
      %p430 = scmp.ne.s32.totalorder %s415, %s429
      %p431 = scmp.eq.s32.totalorder %s38, 0
      %p432 = por %p430, %p431
      %s434 = sadd.s32 %s433, 1
      %p437 = scmp.eq.s32.totalorder %s32, 1
      %p438 = scmp.ne.s32.totalorder %s433, %s435
      %p439 = scmp.eq.s32.totalorder %s32, 0
      %p440 = por %p438, %p439
      %p441 = scmp.ne.s32.totalorder %s433, %s435
      %p442 = scmp.eq.s32.totalorder %s37, 1
      %p443 = por %p441, %p442
      %p444 = scmp.ne.s32.totalorder %s435, %s436
      %p445 = scmp.eq.s32.totalorder %s37, 0
      %p446 = por %p444, %p445
      %p447 = scmp.ne.s32.totalorder %s435, %s436
      %p448 = scmp.eq.s32.totalorder %s38, 1
      %p449 = por %p447, %p448
      %p451 = scmp.ne.s32.totalorder %s436, %s450
      %p452 = scmp.eq.s32.totalorder %s38, 0
      %p453 = por %p451, %p452
      %s455 = sadd.s32 %s454, 1
      %p458 = scmp.eq.s32.totalorder %s32, 1
      %p459 = scmp.ne.s32.totalorder %s454, %s456
      %p460 = scmp.eq.s32.totalorder %s32, 0
      %p461 = por %p459, %p460
      %p462 = scmp.ne.s32.totalorder %s454, %s456
      %p463 = scmp.eq.s32.totalorder %s37, 1
      %p464 = por %p462, %p463
      %p465 = scmp.ne.s32.totalorder %s456, %s457
      %p466 = scmp.eq.s32.totalorder %s37, 0
      %p467 = por %p465, %p466
      %p468 = scmp.ne.s32.totalorder %s456, %s457
      %p469 = scmp.eq.s32.totalorder %s38, 1
      %p470 = por %p468, %p469
      %p472 = scmp.ne.s32.totalorder %s457, %s471
      %p473 = scmp.eq.s32.totalorder %s38, 0
      %p474 = por %p472, %p473
      %s476 = sadd.s32 %s475, 1
      %p479 = scmp.eq.s32.totalorder %s32, 1
      %p480 = scmp.ne.s32.totalorder %s475, %s477
      %p481 = scmp.eq.s32.totalorder %s32, 0
      %p482 = por %p480, %p481
      %p483 = scmp.ne.s32.totalorder %s475, %s477
      %p484 = scmp.eq.s32.totalorder %s37, 1
      %p485 = por %p483, %p484
      %p486 = scmp.ne.s32.totalorder %s477, %s478
      %p487 = scmp.eq.s32.totalorder %s37, 0
      %p488 = por %p486, %p487
      %p489 = scmp.ne.s32.totalorder %s477, %s478
      %p490 = scmp.eq.s32.totalorder %s38, 1
      %p491 = por %p489, %p490
      %p493 = scmp.ne.s32.totalorder %s478, %s492
      %p494 = scmp.eq.s32.totalorder %s38, 0
      %p495 = por %p493, %p494
      %s496 = ssub.s32 %s32, %s39
      %p497 = scmp.eq.s32.totalorder %s496, 0
      %s499 = sadd.s32 %s498, 1
      %s500 = scalar_select %p497, %s498, %s499
      %p503 = pneg %p497
      %p504 = scmp.eq.s32.totalorder %s32, 1
      %p505 = por %p503, %p504
      %p506 = scmp.ne.s32.totalorder %s498, %s501
      %p507 = scmp.eq.s32.totalorder %s32, 0
      %p508 = por %p506, %p507
      %p509 = scmp.ne.s32.totalorder %s498, %s501
      %p510 = scmp.eq.s32.totalorder %s37, 1
      %p511 = por %p509, %p510
      %p512 = scmp.ne.s32.totalorder %s501, %s502
      %p513 = scmp.eq.s32.totalorder %s37, 0
      %p514 = por %p512, %p513
      %p515 = scmp.ne.s32.totalorder %s501, %s502
      %p516 = scmp.eq.s32.totalorder %s38, 1
      %p517 = por %p515, %p516
      %p519 = scmp.ne.s32.totalorder %s502, %s518
      %p520 = scmp.eq.s32.totalorder %s38, 0
      %p521 = por %p519, %p520
      %s522 = ssub.s32 %s32, %s39
      %p523 = scmp.eq.s32.totalorder %s522, 0
      %s525 = sadd.s32 %s524, 1
      %s526 = scalar_select %p523, %s524, %s525
      %p529 = pneg %p523
      %p530 = scmp.eq.s32.totalorder %s32, 1
      %p531 = por %p529, %p530
      %p532 = scmp.ne.s32.totalorder %s524, %s527
      %p533 = scmp.eq.s32.totalorder %s32, 0
      %p534 = por %p532, %p533
      %p535 = scmp.ne.s32.totalorder %s524, %s527
      %p536 = scmp.eq.s32.totalorder %s37, 1
      %p537 = por %p535, %p536
      %p538 = scmp.ne.s32.totalorder %s527, %s528
      %p539 = scmp.eq.s32.totalorder %s37, 0
      %p540 = por %p538, %p539
      %p541 = scmp.ne.s32.totalorder %s527, %s528
      %p542 = scmp.eq.s32.totalorder %s38, 1
      %p543 = por %p541, %p542
      %p545 = scmp.ne.s32.totalorder %s528, %s544
      %p546 = scmp.eq.s32.totalorder %s38, 0
      %p547 = por %p545, %p546
      %p548 = scmp.le.s32.totalorder 1, %s32
      %p549 = scmp.lt.s32.totalorder %s32, 3
      %p550 = pnand %p548, %p549
      %p551 = pneg %p550
      // Predicated region
      $region9: #{run.1} parent=5 // pred_check
        _
      $region10: #{run.1} parent=5 // pred_check_branch
        %553 = sbr.rel (%p550) target = $region12
      $region11: #{run.1} parent=5 // pred_region
        %s554 = ssub.s32 %s32, 1
        // Predicated region
        $region13: #{run.1} parent=11 // pred_check
          %p555 = pneg %p131
        $region14: #{run.1} parent=11 // pred_check_branch
          %557 = sbr.rel (%p555) target = $region16
        $region15: #{run.1} parent=11 // pred_region
          _
        $region16: #{run.1} parent=11 // pred_fallthru
          _
        // Predicated region
        $region17: #{run.1} parent=11 // pred_check
          %p558 = pneg %p152
        $region18: #{run.1} parent=11 // pred_check_branch
          %560 = sbr.rel (%p558) target = $region20
        $region19: #{run.1} parent=11 // pred_region
          _
        $region20: #{run.1} parent=11 // pred_fallthru
          _
        // Predicated region
        $region21: #{run.1} parent=11 // pred_check
          %p561 = pneg %p173
        $region22: #{run.1} parent=11 // pred_check_branch
          %563 = sbr.rel (%p561) target = $region24
        $region23: #{run.1} parent=11 // pred_region
          _
        $region24: #{run.1} parent=11 // pred_fallthru
          _
        // Predicated region
        $region25: #{run.1} parent=11 // pred_check
          %p564 = pneg %p194
        $region26: #{run.1} parent=11 // pred_check_branch
          %566 = sbr.rel (%p564) target = $region28
        $region27: #{run.1} parent=11 // pred_region
          _
        $region28: #{run.1} parent=11 // pred_fallthru
          _
        // Predicated region
        $region29: #{run.1} parent=11 // pred_check
          %p567 = pneg %p215
        $region30: #{run.1} parent=11 // pred_check_branch
          %569 = sbr.rel (%p567) target = $region32
        $region31: #{run.1} parent=11 // pred_region
          _
        $region32: #{run.1} parent=11 // pred_fallthru
          _
        // Predicated region
        $region33: #{run.1} parent=11 // pred_check
          %p570 = pneg %p236
        $region34: #{run.1} parent=11 // pred_check_branch
          %572 = sbr.rel (%p570) target = $region36
        $region35: #{run.1} parent=11 // pred_region
          _
        $region36: #{run.1} parent=11 // pred_fallthru
          _
        // Predicated region
        $region37: #{run.1} parent=11 // pred_check
          %p573 = pneg %p257
        $region38: #{run.1} parent=11 // pred_check_branch
          %575 = sbr.rel (%p573) target = $region40
        $region39: #{run.1} parent=11 // pred_region
          _
        $region40: #{run.1} parent=11 // pred_fallthru
          _
        // Predicated region
        $region41: #{run.1} parent=11 // pred_check
          %p576 = pneg %p278
        $region42: #{run.1} parent=11 // pred_check_branch
          %578 = sbr.rel (%p576) target = $region44
        $region43: #{run.1} parent=11 // pred_region
          _
        $region44: #{run.1} parent=11 // pred_fallthru
          _
        // Predicated region
        $region45: #{run.1} parent=11 // pred_check
          %p579 = pneg %p299
        $region46: #{run.1} parent=11 // pred_check_branch
          %581 = sbr.rel (%p579) target = $region48
        $region47: #{run.1} parent=11 // pred_region
          _
        $region48: #{run.1} parent=11 // pred_fallthru
          _
        // Predicated region
        $region49: #{run.1} parent=11 // pred_check
          %p582 = pneg %p320
        $region50: #{run.1} parent=11 // pred_check_branch
          %584 = sbr.rel (%p582) target = $region52
        $region51: #{run.1} parent=11 // pred_region
          _
        $region52: #{run.1} parent=11 // pred_fallthru
          _
        // Predicated region
        $region53: #{run.1} parent=11 // pred_check
          %p585 = pneg %p341
        $region54: #{run.1} parent=11 // pred_check_branch
          %587 = sbr.rel (%p585) target = $region56
        $region55: #{run.1} parent=11 // pred_region
          _
        $region56: #{run.1} parent=11 // pred_fallthru
          _
        // Predicated region
        $region57: #{run.1} parent=11 // pred_check
          %p588 = pneg %p362
        $region58: #{run.1} parent=11 // pred_check_branch
          %590 = sbr.rel (%p588) target = $region60
        $region59: #{run.1} parent=11 // pred_region
          _
        $region60: #{run.1} parent=11 // pred_fallthru
          _
        // Predicated region
        $region61: #{run.1} parent=11 // pred_check
          %p591 = pneg %p383
        $region62: #{run.1} parent=11 // pred_check_branch
          %593 = sbr.rel (%p591) target = $region64
        $region63: #{run.1} parent=11 // pred_region
          _
        $region64: #{run.1} parent=11 // pred_fallthru
          _
        // Predicated region
        $region65: #{run.1} parent=11 // pred_check
          %p594 = pneg %p404
        $region66: #{run.1} parent=11 // pred_check_branch
          %596 = sbr.rel (%p594) target = $region68
        $region67: #{run.1} parent=11 // pred_region
          _
        $region68: #{run.1} parent=11 // pred_fallthru
          _
        // Predicated region
        $region69: #{run.1} parent=11 // pred_check
          %p597 = pneg %p425
        $region70: #{run.1} parent=11 // pred_check_branch
          %599 = sbr.rel (%p597) target = $region72
        $region71: #{run.1} parent=11 // pred_region
          _
        $region72: #{run.1} parent=11 // pred_fallthru
          _
        // Predicated region
        $region73: #{run.1} parent=11 // pred_check
          %p600 = pneg %p446
        $region74: #{run.1} parent=11 // pred_check_branch
          %602 = sbr.rel (%p600) target = $region76
        $region75: #{run.1} parent=11 // pred_region
          _
        $region76: #{run.1} parent=11 // pred_fallthru
          _
        // Predicated region
        $region77: #{run.1} parent=11 // pred_check
          %p603 = pneg %p467
        $region78: #{run.1} parent=11 // pred_check_branch
          %605 = sbr.rel (%p603) target = $region80
        $region79: #{run.1} parent=11 // pred_region
          _
        $region80: #{run.1} parent=11 // pred_fallthru
          _
        // Predicated region
        $region81: #{run.1} parent=11 // pred_check
          %p606 = pneg %p488
        $region82: #{run.1} parent=11 // pred_check_branch
          %608 = sbr.rel (%p606) target = $region84
        $region83: #{run.1} parent=11 // pred_region
          _
        $region84: #{run.1} parent=11 // pred_fallthru
          _
      $region12: #{run.1} parent=5 // pred_fallthru
        _
      %p609 = scmp.lt.s32.totalorder %s32, 2
      // Predicated region
      $region85: #{run.1} parent=5 // pred_check
        %p610 = pneg %p609
      $region86: #{run.1} parent=5 // pred_check_branch
        %612 = sbr.rel (%p610) target = $region88
      $region87: #{run.1} parent=5 // pred_region
        // Predicated region
        $region89: #{run.1} parent=87 // pred_check
          %p613 = pneg %p52
        $region90: #{run.1} parent=87 // pred_check_branch
          %615 = sbr.rel (%p613) target = $region92
        $region91: #{run.1} parent=87 // pred_region
          %p616 = scmp.lt.s32.totalorder %s32, 1
          %s617 = scalar_select %p616, %s32, 1
          %s618 = smul.addr %s617, 8
          %s619 = scalar_lea.vmem %s0, %s618
        $region92: #{run.1} parent=87 // pred_fallthru
          _
        // Predicated region
        $region93: #{run.1} parent=87 // pred_check
          %p620 = pneg %p78
        $region94: #{run.1} parent=87 // pred_check_branch
          %622 = sbr.rel (%p620) target = $region96
        $region95: #{run.1} parent=87 // pred_region
          %p623 = scmp.lt.s32.totalorder %s32, 1
          %s624 = scalar_select %p623, %s32, 1
          %s625 = smul.addr %s624, 8
          %s626 = scalar_lea.vmem %s1, %s625
        $region96: #{run.1} parent=87 // pred_fallthru
          _
        // Predicated region
        $region97: #{run.1} parent=87 // pred_check
          %p627 = pneg %p104
        $region98: #{run.1} parent=87 // pred_check_branch
          %629 = sbr.rel (%p627) target = $region100
        $region99: #{run.1} parent=87 // pred_region
          %p630 = scmp.lt.s32.totalorder %s32, 1
          %s631 = scalar_select %p630, %s32, 1
          %s632 = scalar_lea.vmem %s2, %s631
        $region100: #{run.1} parent=87 // pred_fallthru
          _
      $region88: #{run.1} parent=5 // pred_fallthru
        _
      %p633 = scmp.le.s32.totalorder 1, %s32
      %p634 = scmp.lt.s32.totalorder %s32, 3
      %p635 = pnand %p633, %p634
      %p636 = pneg %p635
      // Predicated region
      $region101: #{run.1} parent=5 // pred_check
        _
      $region102: #{run.1} parent=5 // pred_check_branch
        %638 = sbr.rel (%p635) target = $region104
      $region103: #{run.1} parent=5 // pred_region
        %s639 = ssub.s32 %s32, 1
        %p640 = scmp.lt.s32.totalorder %s37, 1
        %s641 = scalar_select %p640, %s37, 1
        %s642 = smul.addr %s641, 8
        %s643 = scalar_lea.vmem %s0, %s642
        %p644 = pneg %p58
        %p645 = pneg %p55
        %p646 = scmp.lt.s32.totalorder %s37, 1
        %s647 = scalar_select %p646, %s37, 1
        %s648 = smul.addr %s647, 8
        %s649 = scalar_lea.vmem %s1, %s648
        %p650 = pneg %p84
        %p651 = pneg %p81
        %p652 = scmp.lt.s32.totalorder %s37, 1
        %s653 = scalar_select %p652, %s37, 1
        %s654 = scalar_lea.vmem %s2, %s653
        %p655 = pneg %p110
        %p656 = pneg %p107
        %p657 = pneg %p131
        %p658 = pneg %p128
        %p659 = pneg %p152
        %p660 = pneg %p149
        %p661 = pneg %p173
        %p662 = pneg %p170
        %p663 = pneg %p194
        %p664 = pneg %p191
        %p665 = pneg %p215
        %p666 = pneg %p212
        %p667 = pneg %p236
        %p668 = pneg %p233
        %p669 = pneg %p257
        %p670 = pneg %p254
        %p671 = pneg %p278
        %p672 = pneg %p275
        %p673 = pneg %p299
        %p674 = pneg %p296
        %p675 = pneg %p320
        %p676 = pneg %p317
        %p677 = pneg %p341
        %p678 = pneg %p338
        %p679 = pneg %p362
        %p680 = pneg %p359
        %p681 = pneg %p383
        %p682 = pneg %p380
        %p683 = pneg %p404
        %p684 = pneg %p401
        %p685 = pneg %p425
        %p686 = pneg %p422
        %p687 = pneg %p446
        %p688 = pneg %p443
        %p689 = pneg %p467
        %p690 = pneg %p464
        %p691 = pneg %p488
        %p692 = pneg %p485
        %p693 = pneg %p514
        %p694 = pneg %p511
        %p695 = scmp.lt.s32.totalorder %s37, 1
        %s696 = scalar_select %p695, %s37, 1
        %s697 = smul.addr %s696, 8
        %s698 = scalar_lea.vmem %s21, %s697
        %p699 = pneg %p540
        %p700 = pneg %p537
        %s701 = sand.u32 %s527, 1
        %s702 = scalar_lea.sflag [#allocation3], %s701
        %s703 = sand.u32 %s527, 1
        %s704 = scalar_lea.vmem [#allocation2], %s703
        %p705 = scmp.lt.s32.totalorder %s37, 1
        %s706 = scalar_select %p705, %s37, 1
        %s707 = smul.addr %s706, 8
        %s708 = scalar_lea.vmem %s0, %s707
        %p709 = scmp.lt.s32.totalorder %s37, 1
        %s710 = scalar_select %p709, %s37, 1
        %s711 = smul.addr %s710, 8
        %s712 = scalar_lea.vmem %s1, %s711
        %p713 = scmp.lt.s32.totalorder %s37, 1
        %s714 = scalar_select %p713, %s37, 1
        %s715 = scalar_lea.vmem %s2, %s714
        %p716 = scmp.lt.s32.totalorder %s37, 1
        %s717 = scalar_select %p716, %s37, 1
        %s718 = smul.addr %s717, 8
        %s719 = scalar_lea.vmem %s21, %s718
        %v720 = vld [vmem:[%s708] sm:$0xff]
        %v721 = vlaneseq
        %v722 = vand.u32 %v721, 127
        %723 = vset.pattern.permute.xlu0 0
        %724 = vperm.xlu0 %723, %v720
        %v725 = vpop.permute.xlu0 %724
        %vm726 = vcmp.eq.s32.totalorder %v725, %v722
        %v727 = vsel %vm726, 1, 0
        %v728 = vcvt.s32.f32 %v727
        %v729 = vld [vmem:[%s3] sm:$0xff]
        %v730 = vld [vmem:[%s3 + $0x8] sm:$0xff]
        %v731 = vld [vmem:[%s3 + $0x10] sm:$0xff]
        %v732 = vld [vmem:[%s3 + $0x18] sm:$0xff]
        %v733 = vld [vmem:[%s3 + $0x20] sm:$0xff]
        %v734 = vld [vmem:[%s3 + $0x28] sm:$0xff]
        %v735 = vld [vmem:[%s3 + $0x30] sm:$0xff]
        %v736 = vld [vmem:[%s3 + $0x38] sm:$0xff]
        %v737 = vlaneseq
        %v738 = vshrl.u32 %v737, 7
        %vm739 = vcmp.eq.s32.totalorder %v738, %v722
        %v740 = vsel %vm739, 1, 0
        %v741 = vcvt.s32.f32 %v740
        %v742 = vld [vmem:[%s4] sm:$0xff]
        %v743 = vld [vmem:[%s4 + $0x8] sm:$0xff]
        %vm744 = vcmask 130048
        %v746 = vsel %vm744, %v741, 0
        %748 = vmatpush.msra.mxu0 0.0
        %749 = vmatpush.msra.mxu0 0.0
        %750 = vmatpush.msra.mxu0 0.0
        %751 = vmatpush.msra.mxu0 0.0
        %752 = vmatpush.msra.mxu0 0.0
        %753 = vmatpush.msra.mxu0 0.0
        %754 = vmatpush.msra.mxu0 0.0
        %755 = vmatpush.msra.mxu0 0.0
        %756 = vmatpush.msra.mxu0 0.0
        %757 = vmatpush.msra.mxu0 0.0
        %758 = vmatpush.msra.mxu0 0.0
        %759 = vmatpush.msra.mxu0 0.0
        %760 = vmatpush.msra.mxu0 0.0
        %761 = vmatpush.msra.mxu0 0.0
        %762 = vmatpush.msra.mxu0 %v743
        %763 = vmatpush.msra.mxu0 %v742
        %764 = vmatmul.f32.gmra.mxu0 %v746
        %v765 = vpop.f32.mrf.mxu0
        %v766 = vadd.f32 0.0, %v765
        %767 = vdwg.mxu0
        %vm768 = vcmask 523264
        %v770 = vsel %vm768, %v728, 0
        %772 = vmatpush.msra.mxu0 0.0
        %773 = vmatpush.msra.mxu0 0.0
        %774 = vmatpush.msra.mxu0 0.0
        %775 = vmatpush.msra.mxu0 0.0
        %776 = vmatpush.msra.mxu0 0.0
        %777 = vmatpush.msra.mxu0 0.0
        %778 = vmatpush.msra.mxu0 0.0
        %779 = vmatpush.msra.mxu0 0.0
        %780 = vmatpush.msra.mxu0 %v736
        %781 = vmatpush.msra.mxu0 %v735
        %782 = vmatpush.msra.mxu0 %v734
        %783 = vmatpush.msra.mxu0 %v733
        %784 = vmatpush.msra.mxu0 %v732
        %785 = vmatpush.msra.mxu0 %v731
        %786 = vmatpush.msra.mxu0 %v730
        %787 = vmatpush.msra.mxu0 %v729
        %788 = vmatmul.f32.gmra.mxu0 %v770
        %v789 = vpop.f32.mrf.mxu0
        %v790 = vadd.f32 %v766, %v789
        %791 = vdwg.mxu0
        %v792 = vld [vmem:[%s712] sm:$0xff]
        %v793 = vld [vmem:[%s5] sm:$0x3]
        %v794 = vsub.f32 1.0, %v792
        %796 = vset.pattern.permute.xlu0 0
        %797 = vperm.xlu0 %796, %v794
        %v798 = vpop.permute.xlu0 %797
        %v800 = vperm.slane %v793, 0
        %v801 = vmul.f32 %v798, %v800
        %v802 = vadd.f32 %v790, %v801
        %804 = vset.pattern.permute.xlu0 0
        %805 = vperm.xlu0 %804, %v792
        %v806 = vpop.permute.xlu0 %805
        %v808 = vperm.slane %v793, 1
        %v809 = vmul.f32 %v806, %v808
        %v810 = vadd.f32 %v802, %v809
        %v811 = vld [vmem:[%s6] sm:$0x3]
        %vm812 = vcmask 261120
        %v813 = vsel %vm812, %v810, 0.0
        %814 = vadd.xlane.f32.xlu0 %v813
        %v815 = vpop.xlane.xlu0 %814
        %v816 = vrcp.pop 32.0
        %v817 = vmul.f32 32.0, %v816
        %v818 = vsub.f32 1.0, %v817
        %v819 = vmul.f32 %v816, %v818
        %v820 = vadd.f32 %v816, %v819
        %vm821 = vweird.f32 %v816
        %v822 = vsel %vm821, %v816, %v820
        %v823 = vmul.f32 %v815, %v822
        %v824 = vsub.f32 %v810, %v823
        %v825 = vmul.f32 %v824, %v824
        %v826 = vsel %vm812, %v825, 0.0
        %827 = vadd.xlane.f32.xlu0 %v826
        %v828 = vpop.xlane.xlu0 %827
        %v829 = vmul.f32 %v828, %v822
        %v830 = vadd.f32 %v829, 1e-12
        %v831 = vrsqrt.pop %v830
        %v832 = vmul.f32 %v831, %v830
        %v833 = vmul.f32 %v832, %v831
        %v834 = vmul.f32 0.5, %v833
        %v835 = vsub.f32 1.5, %v834
        %v836 = vmul.f32 %v831, %v835
        %vm837 = vweird.f32 %v830
        %vm838 = vweird.f32 %v831
        %vm839 = vmor %vm837, %vm838
        %v840 = vsel %vm839, %v831, %v836
        %v841 = vmul.f32 %v824, %v840
        %v842 = vperm.slane %v811, 0
        %v843 = vmul.f32 %v841, %v842
        %v844 = vperm.slane %v811, 1
        %v845 = vadd.f32 %v843, %v844
        %v846 = vld [vmem:[%s715] sm:$0x1]
        %v847 = vsub.f32 1.0, %v846
        %v848 = vmul.f32 %v847, -1e+09
        %v849 = vld [vmem:[%s7] sm:$0xff]
        %v850 = vld [vmem:[%s7 + $0x8] sm:$0xff]
        %v851 = vld [vmem:[%s7 + $0x10] sm:$0xff]
        %v852 = vld [vmem:[%s7 + $0x18] sm:$0xff]
        %v853 = vld [vmem:[%s8] sm:$0x1]
        %v855 = vperm.slane %v853, 0
        %v858 = vsel %vm812, %v845, 0
        %860 = vmatpush.msra.mxu0 0.0
        %861 = vmatpush.msra.mxu0 0.0
        %862 = vmatpush.msra.mxu0 0.0
        %863 = vmatpush.msra.mxu0 0.0
        %864 = vmatpush.msra.mxu0 0.0
        %865 = vmatpush.msra.mxu0 0.0
        %866 = vmatpush.msra.mxu0 0.0
        %867 = vmatpush.msra.mxu0 0.0
        %868 = vmatpush.msra.mxu0 0.0
        %869 = vmatpush.msra.mxu0 0.0
        %870 = vmatpush.msra.mxu0 0.0
        %871 = vmatpush.msra.mxu0 0.0
        %872 = vmatpush.msra.mxu0 %v852
        %873 = vmatpush.msra.mxu0 %v851
        %874 = vmatpush.msra.mxu0 %v850
        %875 = vmatpush.msra.mxu0 %v849
        %876 = vmatmul.f32.gmra.mxu0 %v858
        %v877 = vpop.f32.mrf.mxu0
        %v878 = vadd.f32 %v855, %v877
        %879 = vdwg.mxu0
        %881 = vrot.lane.b32.xlu0 %v878, 120
        %v882 = vpop.permute.xlu0 %881
        %883 = vrot.lane.b32.xlu0 %v878, 112
        %v884 = vpop.permute.xlu0 %883
        %885 = vrot.lane.b32.xlu0 %v878, 104
        %v886 = vpop.permute.xlu0 %885
        %887 = vrot.lane.b32.xlu0 %v878, 96
        %v888 = vpop.permute.xlu0 %887
        %vm889 = vcmask 64512
        %v890 = vsel %vm889, %v878, 0
        %v892 = vsel %vm889, %v888, 0
        %894 = vmatpush.xpose.msra.mxu0 0.0
        %895 = vmatpush.xpose.msra.mxu0 0.0
        %896 = vmatpush.xpose.msra.mxu0 0.0
        %897 = vmatpush.xpose.msra.mxu0 0.0
        %898 = vmatpush.xpose.msra.mxu0 0.0
        %899 = vmatpush.xpose.msra.mxu0 0.0
        %900 = vmatpush.xpose.msra.mxu0 0.0
        %901 = vmatpush.xpose.msra.mxu0 0.0
        %902 = vmatpush.xpose.msra.mxu0 0.0
        %903 = vmatpush.xpose.msra.mxu0 0.0
        %904 = vmatpush.xpose.msra.mxu0 0.0
        %905 = vmatpush.xpose.msra.mxu0 0.0
        %906 = vmatpush.xpose.msra.mxu0 0.0
        %907 = vmatpush.xpose.msra.mxu0 0.0
        %908 = vmatpush.xpose.msra.mxu0 0.0
        %909 = vmatpush.xpose.msra.mxu0 %v892
        %910 = vmatmul.f32.gmra.mxu0 %v890
        %v911 = vpop.f32.mrf.mxu0
        %v912 = vadd.f32 0.0, %v911
        %913 = vdwg.mxu0
        %914 = vrot.lane.b32.xlu0 %v882, 96
        %v915 = vpop.permute.xlu0 %914
        %v916 = vsel %vm889, %v882, 0
        %v918 = vsel %vm889, %v915, 0
        %920 = vmatpush.xpose.msra.mxu0 0.0
        %921 = vmatpush.xpose.msra.mxu0 0.0
        %922 = vmatpush.xpose.msra.mxu0 0.0
        %923 = vmatpush.xpose.msra.mxu0 0.0
        %924 = vmatpush.xpose.msra.mxu0 0.0
        %925 = vmatpush.xpose.msra.mxu0 0.0
        %926 = vmatpush.xpose.msra.mxu0 0.0
        %927 = vmatpush.xpose.msra.mxu0 0.0
        %928 = vmatpush.xpose.msra.mxu0 0.0
        %929 = vmatpush.xpose.msra.mxu0 0.0
        %930 = vmatpush.xpose.msra.mxu0 0.0
        %931 = vmatpush.xpose.msra.mxu0 0.0
        %932 = vmatpush.xpose.msra.mxu0 0.0
        %933 = vmatpush.xpose.msra.mxu0 0.0
        %934 = vmatpush.xpose.msra.mxu0 0.0
        %935 = vmatpush.xpose.msra.mxu0 %v918
        %936 = vmatmul.f32.gmra.mxu0 %v916
        %v937 = vpop.f32.mrf.mxu0
        %v938 = vadd.f32 0.0, %v937
        %939 = vdwg.mxu0
        %940 = vrot.lane.b32.xlu0 %v884, 96
        %v941 = vpop.permute.xlu0 %940
        %v942 = vsel %vm889, %v884, 0
        %v944 = vsel %vm889, %v941, 0
        %946 = vmatpush.xpose.msra.mxu0 0.0
        %947 = vmatpush.xpose.msra.mxu0 0.0
        %948 = vmatpush.xpose.msra.mxu0 0.0
        %949 = vmatpush.xpose.msra.mxu0 0.0
        %950 = vmatpush.xpose.msra.mxu0 0.0
        %951 = vmatpush.xpose.msra.mxu0 0.0
        %952 = vmatpush.xpose.msra.mxu0 0.0
        %953 = vmatpush.xpose.msra.mxu0 0.0
        %954 = vmatpush.xpose.msra.mxu0 0.0
        %955 = vmatpush.xpose.msra.mxu0 0.0
        %956 = vmatpush.xpose.msra.mxu0 0.0
        %957 = vmatpush.xpose.msra.mxu0 0.0
        %958 = vmatpush.xpose.msra.mxu0 0.0
        %959 = vmatpush.xpose.msra.mxu0 0.0
        %960 = vmatpush.xpose.msra.mxu0 0.0
        %961 = vmatpush.xpose.msra.mxu0 %v944
        %962 = vmatmul.f32.gmra.mxu0 %v942
        %v963 = vpop.f32.mrf.mxu0
        %v964 = vadd.f32 0.0, %v963
        %965 = vdwg.mxu0
        %966 = vrot.lane.b32.xlu0 %v886, 96
        %v967 = vpop.permute.xlu0 %966
        %v968 = vsel %vm889, %v886, 0
        %v970 = vsel %vm889, %v967, 0
        %972 = vmatpush.xpose.msra.mxu0 0.0
        %973 = vmatpush.xpose.msra.mxu0 0.0
        %974 = vmatpush.xpose.msra.mxu0 0.0
        %975 = vmatpush.xpose.msra.mxu0 0.0
        %976 = vmatpush.xpose.msra.mxu0 0.0
        %977 = vmatpush.xpose.msra.mxu0 0.0
        %978 = vmatpush.xpose.msra.mxu0 0.0
        %979 = vmatpush.xpose.msra.mxu0 0.0
        %980 = vmatpush.xpose.msra.mxu0 0.0
        %981 = vmatpush.xpose.msra.mxu0 0.0
        %982 = vmatpush.xpose.msra.mxu0 0.0
        %983 = vmatpush.xpose.msra.mxu0 0.0
        %984 = vmatpush.xpose.msra.mxu0 0.0
        %985 = vmatpush.xpose.msra.mxu0 0.0
        %986 = vmatpush.xpose.msra.mxu0 0.0
        %987 = vmatpush.xpose.msra.mxu0 %v970
        %988 = vmatmul.f32.gmra.mxu0 %v968
        %v989 = vpop.f32.mrf.mxu0
        %v990 = vadd.f32 0.0, %v989
        %991 = vdwg.mxu0
        %v992 = vmul.f32 %v912, 0.35355338
        %v993 = vmul.f32 %v938, 0.35355338
        %v994 = vmul.f32 %v964, 0.35355338
        %v995 = vmul.f32 %v990, 0.35355338
        %v997 = vperm.slane %v848, 0
        %v999 = vadd.f32 %v992, %v997
        %v1000 = vadd.f32 %v993, %v997
        %v1001 = vadd.f32 %v994, %v997
        %v1002 = vadd.f32 %v995, %v997
        %v1003 = vsel %vm889, %v999, -inf
        %1004 = vmax.xlane.f32.xlu0 %v1003
        %v1005 = vpop.xlane.xlu0 %1004
        %v1006 = vsel %vm889, %v1000, -inf
        %1007 = vmax.xlane.f32.xlu0 %v1006
        %v1008 = vpop.xlane.xlu0 %1007
        %v1009 = vsel %vm889, %v1001, -inf
        %1010 = vmax.xlane.f32.xlu0 %v1009
        %v1011 = vpop.xlane.xlu0 %1010
        %v1012 = vsel %vm889, %v1002, -inf
        %1013 = vmax.xlane.f32.xlu0 %v1012
        %v1014 = vpop.xlane.xlu0 %1013
        %v1015 = vsub.f32 %v999, %v1005
        %v1016 = vsub.f32 %v1000, %v1008
        %v1017 = vsub.f32 %v1001, %v1011
        %v1018 = vsub.f32 %v1002, %v1014
        %v1019 = vmul.f32 %v1015, 1.442695
        %v1020 = vpow.pop %v1019
        %v1021 = vmul.f32 %v1016, 1.442695
        %v1022 = vpow.pop %v1021
        %v1023 = vmul.f32 %v1017, 1.442695
        %v1024 = vpow.pop %v1023
        %v1025 = vmul.f32 %v1018, 1.442695
        %v1026 = vpow.pop %v1025
        %v1027 = vsel %vm889, %v1020, 0.0
        %1028 = vadd.xlane.f32.xlu0 %v1027
        %v1029 = vpop.xlane.xlu0 %1028
        %v1030 = vsel %vm889, %v1022, 0.0
        %1031 = vadd.xlane.f32.xlu0 %v1030
        %v1032 = vpop.xlane.xlu0 %1031
        %v1033 = vsel %vm889, %v1024, 0.0
        %1034 = vadd.xlane.f32.xlu0 %v1033
        %v1035 = vpop.xlane.xlu0 %1034
        %v1036 = vsel %vm889, %v1026, 0.0
        %1037 = vadd.xlane.f32.xlu0 %v1036
        %v1038 = vpop.xlane.xlu0 %1037
        %v1039 = vrcp.pop %v1029
        %v1040 = vrcp.pop %v1032
        %v1041 = vrcp.pop %v1035
        %v1042 = vrcp.pop %v1038
        %v1043 = vmul.f32 %v1020, %v1039
        %v1044 = vmul.f32 %v1022, %v1040
        %v1045 = vmul.f32 %v1024, %v1041
        %v1046 = vmul.f32 %v1026, %v1042
        %1047 = vrot.lane.b32.xlu0 %v878, 64
        %v1048 = vpop.permute.xlu0 %1047
        %v1051 = vsel %vm889, %v1043, 0
        %1053 = vmatpush.msra.mxu0 0.0
        %1054 = vmatpush.msra.mxu0 0.0
        %1055 = vmatpush.msra.mxu0 0.0
        %1056 = vmatpush.msra.mxu0 0.0
        %1057 = vmatpush.msra.mxu0 0.0
        %1058 = vmatpush.msra.mxu0 0.0
        %1059 = vmatpush.msra.mxu0 0.0
        %1060 = vmatpush.msra.mxu0 0.0
        %1061 = vmatpush.msra.mxu0 0.0
        %1062 = vmatpush.msra.mxu0 0.0
        %1063 = vmatpush.msra.mxu0 0.0
        %1064 = vmatpush.msra.mxu0 0.0
        %1065 = vmatpush.msra.mxu0 0.0
        %1066 = vmatpush.msra.mxu0 0.0
        %1067 = vmatpush.msra.mxu0 0.0
        %1068 = vmatpush.msra.mxu0 %v1048
        %1069 = vmatmul.f32.gmra.mxu0 %v1051
        %v1070 = vpop.f32.mrf.mxu0
        %v1071 = vadd.f32 0.0, %v1070
        %1072 = vdwg.mxu0
        %1073 = vrot.lane.b32.xlu0 %v882, 64
        %v1074 = vpop.permute.xlu0 %1073
        %v1077 = vsel %vm889, %v1044, 0
        %1079 = vmatpush.msra.mxu0 0.0
        %1080 = vmatpush.msra.mxu0 0.0
        %1081 = vmatpush.msra.mxu0 0.0
        %1082 = vmatpush.msra.mxu0 0.0
        %1083 = vmatpush.msra.mxu0 0.0
        %1084 = vmatpush.msra.mxu0 0.0
        %1085 = vmatpush.msra.mxu0 0.0
        %1086 = vmatpush.msra.mxu0 0.0
        %1087 = vmatpush.msra.mxu0 0.0
        %1088 = vmatpush.msra.mxu0 0.0
        %1089 = vmatpush.msra.mxu0 0.0
        %1090 = vmatpush.msra.mxu0 0.0
        %1091 = vmatpush.msra.mxu0 0.0
        %1092 = vmatpush.msra.mxu0 0.0
        %1093 = vmatpush.msra.mxu0 0.0
        %1094 = vmatpush.msra.mxu0 %v1074
        %1095 = vmatmul.f32.gmra.mxu0 %v1077
        %v1096 = vpop.f32.mrf.mxu0
        %v1097 = vadd.f32 0.0, %v1096
        %1098 = vdwg.mxu0
        %1099 = vrot.lane.b32.xlu0 %v884, 64
        %v1100 = vpop.permute.xlu0 %1099
        %v1103 = vsel %vm889, %v1045, 0
        %1105 = vmatpush.msra.mxu0 0.0
        %1106 = vmatpush.msra.mxu0 0.0
        %1107 = vmatpush.msra.mxu0 0.0
        %1108 = vmatpush.msra.mxu0 0.0
        %1109 = vmatpush.msra.mxu0 0.0
        %1110 = vmatpush.msra.mxu0 0.0
        %1111 = vmatpush.msra.mxu0 0.0
        %1112 = vmatpush.msra.mxu0 0.0
        %1113 = vmatpush.msra.mxu0 0.0
        %1114 = vmatpush.msra.mxu0 0.0
        %1115 = vmatpush.msra.mxu0 0.0
        %1116 = vmatpush.msra.mxu0 0.0
        %1117 = vmatpush.msra.mxu0 0.0
        %1118 = vmatpush.msra.mxu0 0.0
        %1119 = vmatpush.msra.mxu0 0.0
        %1120 = vmatpush.msra.mxu0 %v1100
        %1121 = vmatmul.f32.gmra.mxu0 %v1103
        %v1122 = vpop.f32.mrf.mxu0
        %v1123 = vadd.f32 0.0, %v1122
        %1124 = vdwg.mxu0
        %1125 = vrot.lane.b32.xlu0 %v886, 64
        %v1126 = vpop.permute.xlu0 %1125
        %v1129 = vsel %vm889, %v1046, 0
        %1131 = vmatpush.msra.mxu0 0.0
        %1132 = vmatpush.msra.mxu0 0.0
        %1133 = vmatpush.msra.mxu0 0.0
        %1134 = vmatpush.msra.mxu0 0.0
        %1135 = vmatpush.msra.mxu0 0.0
        %1136 = vmatpush.msra.mxu0 0.0
        %1137 = vmatpush.msra.mxu0 0.0
        %1138 = vmatpush.msra.mxu0 0.0
        %1139 = vmatpush.msra.mxu0 0.0
        %1140 = vmatpush.msra.mxu0 0.0
        %1141 = vmatpush.msra.mxu0 0.0
        %1142 = vmatpush.msra.mxu0 0.0
        %1143 = vmatpush.msra.mxu0 0.0
        %1144 = vmatpush.msra.mxu0 0.0
        %1145 = vmatpush.msra.mxu0 0.0
        %1146 = vmatpush.msra.mxu0 %v1126
        %1147 = vmatmul.f32.gmra.mxu0 %v1129
        %v1148 = vpop.f32.mrf.mxu0
        %v1149 = vadd.f32 0.0, %v1148
        %1150 = vdwg.mxu0
        %1152 = vrot.lane.b32.xlu0 %v1097, 8
        %v1153 = vpop.permute.xlu0 %1152
        %1156 = vrot.lane.b32.xlu0 %v1123, 16
        %v1157 = vpop.permute.xlu0 %1156
        %1160 = vrot.lane.b32.xlu0 %v1149, 24
        %v1161 = vpop.permute.xlu0 %1160
        %v1163 = vsel %vm889, %v1071, %v1153
        %v1164 = vsel %vm744, %v1163, %v1157
        %vm1165 = vcmask 195584
        %v1166 = vsel %vm1165, %v1164, %v1161
        %v1167 = vld [vmem:[%s9] sm:$0xff]
        %v1168 = vld [vmem:[%s9 + $0x8] sm:$0xff]
        %v1169 = vld [vmem:[%s9 + $0x10] sm:$0xff]
        %v1170 = vld [vmem:[%s9 + $0x18] sm:$0xff]
        %v1171 = vld [vmem:[%s10] sm:$0x1]
        %v1173 = vperm.slane %v1171, 0
        %v1176 = vsel %vm812, %v1166, 0
        %1178 = vmatpush.msra.mxu0 0.0
        %1179 = vmatpush.msra.mxu0 0.0
        %1180 = vmatpush.msra.mxu0 0.0
        %1181 = vmatpush.msra.mxu0 0.0
        %1182 = vmatpush.msra.mxu0 0.0
        %1183 = vmatpush.msra.mxu0 0.0
        %1184 = vmatpush.msra.mxu0 0.0
        %1185 = vmatpush.msra.mxu0 0.0
        %1186 = vmatpush.msra.mxu0 0.0
        %1187 = vmatpush.msra.mxu0 0.0
        %1188 = vmatpush.msra.mxu0 0.0
        %1189 = vmatpush.msra.mxu0 0.0
        %1190 = vmatpush.msra.mxu0 %v1170
        %1191 = vmatpush.msra.mxu0 %v1169
        %1192 = vmatpush.msra.mxu0 %v1168
        %1193 = vmatpush.msra.mxu0 %v1167
        %1194 = vmatmul.f32.gmra.mxu0 %v1176
        %v1195 = vpop.f32.mrf.mxu0
        %v1196 = vadd.f32 %v1173, %v1195
        %1197 = vdwg.mxu0
        %v1198 = vld [vmem:[%s11] sm:$0x3]
        %v1199 = vadd.f32 %v1196, %v845
        %v1200 = vsel %vm812, %v1199, 0.0
        %1201 = vadd.xlane.f32.xlu0 %v1200
        %v1202 = vpop.xlane.xlu0 %1201
        %v1203 = vmul.f32 %v1202, %v822
        %v1204 = vsub.f32 %v1199, %v1203
        %v1205 = vmul.f32 %v1204, %v1204
        %v1206 = vsel %vm812, %v1205, 0.0
        %1207 = vadd.xlane.f32.xlu0 %v1206
        %v1208 = vpop.xlane.xlu0 %1207
        %v1209 = vmul.f32 %v1208, %v822
        %v1210 = vadd.f32 %v1209, 1e-12
        %v1211 = vrsqrt.pop %v1210
        %v1212 = vmul.f32 %v1211, %v1210
        %v1213 = vmul.f32 %v1212, %v1211
        %v1214 = vmul.f32 0.5, %v1213
        %v1215 = vsub.f32 1.5, %v1214
        %v1216 = vmul.f32 %v1211, %v1215
        %vm1217 = vweird.f32 %v1210
        %vm1218 = vweird.f32 %v1211
        %vm1219 = vmor %vm1217, %vm1218
        %v1220 = vsel %vm1219, %v1211, %v1216
        %v1221 = vmul.f32 %v1204, %v1220
        %v1222 = vperm.slane %v1198, 0
        %v1223 = vmul.f32 %v1221, %v1222
        %v1224 = vperm.slane %v1198, 1
        %v1225 = vadd.f32 %v1223, %v1224
        %v1226 = vld [vmem:[%s12] sm:$0xff]
        %v1227 = vld [vmem:[%s12 + $0x8] sm:$0xff]
        %v1228 = vld [vmem:[%s12 + $0x10] sm:$0xff]
        %v1229 = vld [vmem:[%s12 + $0x18] sm:$0xff]
        %v1230 = vld [vmem:[%s13] sm:$0x1]
        %v1232 = vperm.slane %v1230, 0
        %v1235 = vsel %vm812, %v1225, 0
        %1237 = vmatpush.msra.mxu0 0.0
        %1238 = vmatpush.msra.mxu0 0.0
        %1239 = vmatpush.msra.mxu0 0.0
        %1240 = vmatpush.msra.mxu0 0.0
        %1241 = vmatpush.msra.mxu0 0.0
        %1242 = vmatpush.msra.mxu0 0.0
        %1243 = vmatpush.msra.mxu0 0.0
        %1244 = vmatpush.msra.mxu0 0.0
        %1245 = vmatpush.msra.mxu0 0.0
        %1246 = vmatpush.msra.mxu0 0.0
        %1247 = vmatpush.msra.mxu0 0.0
        %1248 = vmatpush.msra.mxu0 0.0
        %1249 = vmatpush.msra.mxu0 %v1229
        %1250 = vmatpush.msra.mxu0 %v1228
        %1251 = vmatpush.msra.mxu0 %v1227
        %1252 = vmatpush.msra.mxu0 %v1226
        %1253 = vmatmul.f32.gmra.mxu0 %v1235
        %v1254 = vpop.f32.mrf.mxu0
        %v1255 = vadd.f32 %v1232, %v1254
        %1256 = vdwg.mxu0
        %v1257 = vmul.f32 %v1255, %v1255
        %v1258 = vmul.f32 %v1255, %v1257
        %v1259 = vmul.f32 %v1258, 0.044715
        %v1260 = vadd.f32 %v1255, %v1259
        %v1261 = vmul.f32 %v1260, 0.7978846
        %v1262 = vtanh.pop %v1261
        %v1263 = vadd.f32 %v1262, 1.0
        %v1264 = vmul.f32 %v1263, 0.5
        %v1265 = vmul.f32 %v1255, %v1264
        %v1266 = vld [vmem:[%s14] sm:$0xff]
        %v1267 = vld [vmem:[%s14 + $0x8] sm:$0xff]
        %v1268 = vld [vmem:[%s14 + $0x10] sm:$0xff]
        %v1269 = vld [vmem:[%s14 + $0x18] sm:$0xff]
        %v1270 = vld [vmem:[%s14 + $0x20] sm:$0xff]
        %v1271 = vld [vmem:[%s14 + $0x28] sm:$0xff]
        %v1272 = vld [vmem:[%s14 + $0x30] sm:$0xff]
        %v1273 = vld [vmem:[%s14 + $0x38] sm:$0xff]
        %v1274 = vld [vmem:[%s15] sm:$0x1]
        %v1276 = vperm.slane %v1274, 0
        %v1279 = vsel %vm768, %v1265, 0
        %1281 = vmatpush.msra.mxu0 0.0
        %1282 = vmatpush.msra.mxu0 0.0
        %1283 = vmatpush.msra.mxu0 0.0
        %1284 = vmatpush.msra.mxu0 0.0
        %1285 = vmatpush.msra.mxu0 0.0
        %1286 = vmatpush.msra.mxu0 0.0
        %1287 = vmatpush.msra.mxu0 0.0
        %1288 = vmatpush.msra.mxu0 0.0
        %1289 = vmatpush.msra.mxu0 %v1273
        %1290 = vmatpush.msra.mxu0 %v1272
        %1291 = vmatpush.msra.mxu0 %v1271
        %1292 = vmatpush.msra.mxu0 %v1270
        %1293 = vmatpush.msra.mxu0 %v1269
        %1294 = vmatpush.msra.mxu0 %v1268
        %1295 = vmatpush.msra.mxu0 %v1267
        %1296 = vmatpush.msra.mxu0 %v1266
        %1297 = vmatmul.f32.gmra.mxu0 %v1279
        %v1298 = vpop.f32.mrf.mxu0
        %v1299 = vadd.f32 %v1276, %v1298
        %1300 = vdwg.mxu0
        %v1301 = vld [vmem:[%s16] sm:$0x3]
        %v1302 = vadd.f32 %v1299, %v1225
        %v1303 = vsel %vm812, %v1302, 0.0
        %1304 = vadd.xlane.f32.xlu0 %v1303
        %v1305 = vpop.xlane.xlu0 %1304
        %v1306 = vmul.f32 %v1305, %v822
        %v1307 = vsub.f32 %v1302, %v1306
        %v1308 = vmul.f32 %v1307, %v1307
        %v1309 = vsel %vm812, %v1308, 0.0
        %1310 = vadd.xlane.f32.xlu0 %v1309
        %v1311 = vpop.xlane.xlu0 %1310
        %v1312 = vmul.f32 %v1311, %v822
        %v1313 = vadd.f32 %v1312, 1e-12
        %v1314 = vrsqrt.pop %v1313
        %v1315 = vmul.f32 %v1314, %v1313
        %v1316 = vmul.f32 %v1315, %v1314
        %v1317 = vmul.f32 0.5, %v1316
        %v1318 = vsub.f32 1.5, %v1317
        %v1319 = vmul.f32 %v1314, %v1318
        %vm1320 = vweird.f32 %v1313
        %vm1321 = vweird.f32 %v1314
        %vm1322 = vmor %vm1320, %vm1321
        %v1323 = vsel %vm1322, %v1314, %v1319
        %v1324 = vmul.f32 %v1307, %v1323
        %v1325 = vperm.slane %v1301, 0
        %v1326 = vmul.f32 %v1324, %v1325
        %v1327 = vperm.slane %v1301, 1
        %v1328 = vadd.f32 %v1326, %v1327
        %s1329 = scalar_lea.vmem %s7, 32
        %v1330 = vld [vmem:[%s1329] sm:$0xff]
        %v1331 = vld [vmem:[%s1329 + $0x8] sm:$0xff]
        %v1332 = vld [vmem:[%s1329 + $0x10] sm:$0xff]
        %v1333 = vld [vmem:[%s1329 + $0x18] sm:$0xff]
        %s1334 = scalar_lea.vmem %s8, 1
        %v1335 = vld [vmem:[%s1334] sm:$0x1]
        %v1337 = vperm.slane %v1335, 0
        %v1340 = vsel %vm812, %v1328, 0
        %1342 = vmatpush.msra.mxu0 0.0
        %1343 = vmatpush.msra.mxu0 0.0
        %1344 = vmatpush.msra.mxu0 0.0
        %1345 = vmatpush.msra.mxu0 0.0
        %1346 = vmatpush.msra.mxu0 0.0
        %1347 = vmatpush.msra.mxu0 0.0
        %1348 = vmatpush.msra.mxu0 0.0
        %1349 = vmatpush.msra.mxu0 0.0
        %1350 = vmatpush.msra.mxu0 0.0
        %1351 = vmatpush.msra.mxu0 0.0
        %1352 = vmatpush.msra.mxu0 0.0
        %1353 = vmatpush.msra.mxu0 0.0
        %1354 = vmatpush.msra.mxu0 %v1333
        %1355 = vmatpush.msra.mxu0 %v1332
        %1356 = vmatpush.msra.mxu0 %v1331
        %1357 = vmatpush.msra.mxu0 %v1330
        %1358 = vmatmul.f32.gmra.mxu0 %v1340
        %v1359 = vpop.f32.mrf.mxu0
        %v1360 = vadd.f32 %v1337, %v1359
        %1361 = vdwg.mxu0
        %1363 = vrot.lane.b32.xlu0 %v1360, 120
        %v1364 = vpop.permute.xlu0 %1363
        %1365 = vrot.lane.b32.xlu0 %v1360, 112
        %v1366 = vpop.permute.xlu0 %1365
        %1367 = vrot.lane.b32.xlu0 %v1360, 104
        %v1368 = vpop.permute.xlu0 %1367
        %1369 = vrot.lane.b32.xlu0 %v1360, 96
        %v1370 = vpop.permute.xlu0 %1369
        %v1371 = vsel %vm889, %v1360, 0
        %v1373 = vsel %vm889, %v1370, 0
        %1375 = vmatpush.xpose.msra.mxu0 0.0
        %1376 = vmatpush.xpose.msra.mxu0 0.0
        %1377 = vmatpush.xpose.msra.mxu0 0.0
        %1378 = vmatpush.xpose.msra.mxu0 0.0
        %1379 = vmatpush.xpose.msra.mxu0 0.0
        %1380 = vmatpush.xpose.msra.mxu0 0.0
        %1381 = vmatpush.xpose.msra.mxu0 0.0
        %1382 = vmatpush.xpose.msra.mxu0 0.0
        %1383 = vmatpush.xpose.msra.mxu0 0.0
        %1384 = vmatpush.xpose.msra.mxu0 0.0
        %1385 = vmatpush.xpose.msra.mxu0 0.0
        %1386 = vmatpush.xpose.msra.mxu0 0.0
        %1387 = vmatpush.xpose.msra.mxu0 0.0
        %1388 = vmatpush.xpose.msra.mxu0 0.0
        %1389 = vmatpush.xpose.msra.mxu0 0.0
        %1390 = vmatpush.xpose.msra.mxu0 %v1373
        %1391 = vmatmul.f32.gmra.mxu0 %v1371
        %v1392 = vpop.f32.mrf.mxu0
        %v1393 = vadd.f32 0.0, %v1392
        %1394 = vdwg.mxu0
        %1395 = vrot.lane.b32.xlu0 %v1364, 96
        %v1396 = vpop.permute.xlu0 %1395
        %v1397 = vsel %vm889, %v1364, 0
        %v1399 = vsel %vm889, %v1396, 0
        %1401 = vmatpush.xpose.msra.mxu0 0.0
        %1402 = vmatpush.xpose.msra.mxu0 0.0
        %1403 = vmatpush.xpose.msra.mxu0 0.0
        %1404 = vmatpush.xpose.msra.mxu0 0.0
        %1405 = vmatpush.xpose.msra.mxu0 0.0
        %1406 = vmatpush.xpose.msra.mxu0 0.0
        %1407 = vmatpush.xpose.msra.mxu0 0.0
        %1408 = vmatpush.xpose.msra.mxu0 0.0
        %1409 = vmatpush.xpose.msra.mxu0 0.0
        %1410 = vmatpush.xpose.msra.mxu0 0.0
        %1411 = vmatpush.xpose.msra.mxu0 0.0
        %1412 = vmatpush.xpose.msra.mxu0 0.0
        %1413 = vmatpush.xpose.msra.mxu0 0.0
        %1414 = vmatpush.xpose.msra.mxu0 0.0
        %1415 = vmatpush.xpose.msra.mxu0 0.0
        %1416 = vmatpush.xpose.msra.mxu0 %v1399
        %1417 = vmatmul.f32.gmra.mxu0 %v1397
        %v1418 = vpop.f32.mrf.mxu0
        %v1419 = vadd.f32 0.0, %v1418
        %1420 = vdwg.mxu0
        %1421 = vrot.lane.b32.xlu0 %v1366, 96
        %v1422 = vpop.permute.xlu0 %1421
        %v1423 = vsel %vm889, %v1366, 0
        %v1425 = vsel %vm889, %v1422, 0
        %1427 = vmatpush.xpose.msra.mxu0 0.0
        %1428 = vmatpush.xpose.msra.mxu0 0.0
        %1429 = vmatpush.xpose.msra.mxu0 0.0
        %1430 = vmatpush.xpose.msra.mxu0 0.0
        %1431 = vmatpush.xpose.msra.mxu0 0.0
        %1432 = vmatpush.xpose.msra.mxu0 0.0
        %1433 = vmatpush.xpose.msra.mxu0 0.0
        %1434 = vmatpush.xpose.msra.mxu0 0.0
        %1435 = vmatpush.xpose.msra.mxu0 0.0
        %1436 = vmatpush.xpose.msra.mxu0 0.0
        %1437 = vmatpush.xpose.msra.mxu0 0.0
        %1438 = vmatpush.xpose.msra.mxu0 0.0
        %1439 = vmatpush.xpose.msra.mxu0 0.0
        %1440 = vmatpush.xpose.msra.mxu0 0.0
        %1441 = vmatpush.xpose.msra.mxu0 0.0
        %1442 = vmatpush.xpose.msra.mxu0 %v1425
        %1443 = vmatmul.f32.gmra.mxu0 %v1423
        %v1444 = vpop.f32.mrf.mxu0
        %v1445 = vadd.f32 0.0, %v1444
        %1446 = vdwg.mxu0
        %1447 = vrot.lane.b32.xlu0 %v1368, 96
        %v1448 = vpop.permute.xlu0 %1447
        %v1449 = vsel %vm889, %v1368, 0
        %v1451 = vsel %vm889, %v1448, 0
        %1453 = vmatpush.xpose.msra.mxu0 0.0
        %1454 = vmatpush.xpose.msra.mxu0 0.0
        %1455 = vmatpush.xpose.msra.mxu0 0.0
        %1456 = vmatpush.xpose.msra.mxu0 0.0
        %1457 = vmatpush.xpose.msra.mxu0 0.0
        %1458 = vmatpush.xpose.msra.mxu0 0.0
        %1459 = vmatpush.xpose.msra.mxu0 0.0
        %1460 = vmatpush.xpose.msra.mxu0 0.0
        %1461 = vmatpush.xpose.msra.mxu0 0.0
        %1462 = vmatpush.xpose.msra.mxu0 0.0
        %1463 = vmatpush.xpose.msra.mxu0 0.0
        %1464 = vmatpush.xpose.msra.mxu0 0.0
        %1465 = vmatpush.xpose.msra.mxu0 0.0
        %1466 = vmatpush.xpose.msra.mxu0 0.0
        %1467 = vmatpush.xpose.msra.mxu0 0.0
        %1468 = vmatpush.xpose.msra.mxu0 %v1451
        %1469 = vmatmul.f32.gmra.mxu0 %v1449
        %v1470 = vpop.f32.mrf.mxu0
        %v1471 = vadd.f32 0.0, %v1470
        %1472 = vdwg.mxu0
        %v1473 = vmul.f32 %v1393, 0.35355338
        %v1474 = vmul.f32 %v1419, 0.35355338
        %v1475 = vmul.f32 %v1445, 0.35355338
        %v1476 = vmul.f32 %v1471, 0.35355338
        %v1477 = vadd.f32 %v1473, %v997
        %v1478 = vadd.f32 %v1474, %v997
        %v1479 = vadd.f32 %v1475, %v997
        %v1480 = vadd.f32 %v1476, %v997
        %v1481 = vsel %vm889, %v1477, -inf
        %1482 = vmax.xlane.f32.xlu0 %v1481
        %v1483 = vpop.xlane.xlu0 %1482
        %v1484 = vsel %vm889, %v1478, -inf
        %1485 = vmax.xlane.f32.xlu0 %v1484
        %v1486 = vpop.xlane.xlu0 %1485
        %v1487 = vsel %vm889, %v1479, -inf
        %1488 = vmax.xlane.f32.xlu0 %v1487
        %v1489 = vpop.xlane.xlu0 %1488
        %v1490 = vsel %vm889, %v1480, -inf
        %1491 = vmax.xlane.f32.xlu0 %v1490
        %v1492 = vpop.xlane.xlu0 %1491
        %v1493 = vsub.f32 %v1477, %v1483
        %v1494 = vsub.f32 %v1478, %v1486
        %v1495 = vsub.f32 %v1479, %v1489
        %v1496 = vsub.f32 %v1480, %v1492
        %v1497 = vmul.f32 %v1493, 1.442695
        %v1498 = vpow.pop %v1497
        %v1499 = vmul.f32 %v1494, 1.442695
        %v1500 = vpow.pop %v1499
        %v1501 = vmul.f32 %v1495, 1.442695
        %v1502 = vpow.pop %v1501
        %v1503 = vmul.f32 %v1496, 1.442695
        %v1504 = vpow.pop %v1503
        %v1505 = vsel %vm889, %v1498, 0.0
        %1506 = vadd.xlane.f32.xlu0 %v1505
        %v1507 = vpop.xlane.xlu0 %1506
        %v1508 = vsel %vm889, %v1500, 0.0
        %1509 = vadd.xlane.f32.xlu0 %v1508
        %v1510 = vpop.xlane.xlu0 %1509
        %v1511 = vsel %vm889, %v1502, 0.0
        %1512 = vadd.xlane.f32.xlu0 %v1511
        %v1513 = vpop.xlane.xlu0 %1512
        %v1514 = vsel %vm889, %v1504, 0.0
        %1515 = vadd.xlane.f32.xlu0 %v1514
        %v1516 = vpop.xlane.xlu0 %1515
        %v1517 = vrcp.pop %v1507
        %v1518 = vrcp.pop %v1510
        %v1519 = vrcp.pop %v1513
        %v1520 = vrcp.pop %v1516
        %v1521 = vmul.f32 %v1498, %v1517
        %v1522 = vmul.f32 %v1500, %v1518
        %v1523 = vmul.f32 %v1502, %v1519
        %v1524 = vmul.f32 %v1504, %v1520
        %1525 = vrot.lane.b32.xlu0 %v1360, 64
        %v1526 = vpop.permute.xlu0 %1525
        %v1529 = vsel %vm889, %v1521, 0
        %1531 = vmatpush.msra.mxu0 0.0
        %1532 = vmatpush.msra.mxu0 0.0
        %1533 = vmatpush.msra.mxu0 0.0
        %1534 = vmatpush.msra.mxu0 0.0
        %1535 = vmatpush.msra.mxu0 0.0
        %1536 = vmatpush.msra.mxu0 0.0
        %1537 = vmatpush.msra.mxu0 0.0
        %1538 = vmatpush.msra.mxu0 0.0
        %1539 = vmatpush.msra.mxu0 0.0
        %1540 = vmatpush.msra.mxu0 0.0
        %1541 = vmatpush.msra.mxu0 0.0
        %1542 = vmatpush.msra.mxu0 0.0
        %1543 = vmatpush.msra.mxu0 0.0
        %1544 = vmatpush.msra.mxu0 0.0
        %1545 = vmatpush.msra.mxu0 0.0
        %1546 = vmatpush.msra.mxu0 %v1526
        %1547 = vmatmul.f32.gmra.mxu0 %v1529
        %v1548 = vpop.f32.mrf.mxu0
        %v1549 = vadd.f32 0.0, %v1548
        %1550 = vdwg.mxu0
        %1551 = vrot.lane.b32.xlu0 %v1364, 64
        %v1552 = vpop.permute.xlu0 %1551
        %v1555 = vsel %vm889, %v1522, 0
        %1557 = vmatpush.msra.mxu0 0.0
        %1558 = vmatpush.msra.mxu0 0.0
        %1559 = vmatpush.msra.mxu0 0.0
        %1560 = vmatpush.msra.mxu0 0.0
        %1561 = vmatpush.msra.mxu0 0.0
        %1562 = vmatpush.msra.mxu0 0.0
        %1563 = vmatpush.msra.mxu0 0.0
        %1564 = vmatpush.msra.mxu0 0.0
        %1565 = vmatpush.msra.mxu0 0.0
        %1566 = vmatpush.msra.mxu0 0.0
        %1567 = vmatpush.msra.mxu0 0.0
        %1568 = vmatpush.msra.mxu0 0.0
        %1569 = vmatpush.msra.mxu0 0.0
        %1570 = vmatpush.msra.mxu0 0.0
        %1571 = vmatpush.msra.mxu0 0.0
        %1572 = vmatpush.msra.mxu0 %v1552
        %1573 = vmatmul.f32.gmra.mxu0 %v1555
        %v1574 = vpop.f32.mrf.mxu0
        %v1575 = vadd.f32 0.0, %v1574
        %1576 = vdwg.mxu0
        %1577 = vrot.lane.b32.xlu0 %v1366, 64
        %v1578 = vpop.permute.xlu0 %1577
        %v1581 = vsel %vm889, %v1523, 0
        %1583 = vmatpush.msra.mxu0 0.0
        %1584 = vmatpush.msra.mxu0 0.0
        %1585 = vmatpush.msra.mxu0 0.0
        %1586 = vmatpush.msra.mxu0 0.0
        %1587 = vmatpush.msra.mxu0 0.0
        %1588 = vmatpush.msra.mxu0 0.0
        %1589 = vmatpush.msra.mxu0 0.0
        %1590 = vmatpush.msra.mxu0 0.0
        %1591 = vmatpush.msra.mxu0 0.0
        %1592 = vmatpush.msra.mxu0 0.0
        %1593 = vmatpush.msra.mxu0 0.0
        %1594 = vmatpush.msra.mxu0 0.0
        %1595 = vmatpush.msra.mxu0 0.0
        %1596 = vmatpush.msra.mxu0 0.0
        %1597 = vmatpush.msra.mxu0 0.0
        %1598 = vmatpush.msra.mxu0 %v1578
        %1599 = vmatmul.f32.gmra.mxu0 %v1581
        %v1600 = vpop.f32.mrf.mxu0
        %v1601 = vadd.f32 0.0, %v1600
        %1602 = vdwg.mxu0
        %1603 = vrot.lane.b32.xlu0 %v1368, 64
        %v1604 = vpop.permute.xlu0 %1603
        %v1607 = vsel %vm889, %v1524, 0
        %1609 = vmatpush.msra.mxu0 0.0
        %1610 = vmatpush.msra.mxu0 0.0
        %1611 = vmatpush.msra.mxu0 0.0
        %1612 = vmatpush.msra.mxu0 0.0
        %1613 = vmatpush.msra.mxu0 0.0
        %1614 = vmatpush.msra.mxu0 0.0
        %1615 = vmatpush.msra.mxu0 0.0
        %1616 = vmatpush.msra.mxu0 0.0
        %1617 = vmatpush.msra.mxu0 0.0
        %1618 = vmatpush.msra.mxu0 0.0
        %1619 = vmatpush.msra.mxu0 0.0
        %1620 = vmatpush.msra.mxu0 0.0
        %1621 = vmatpush.msra.mxu0 0.0
        %1622 = vmatpush.msra.mxu0 0.0
        %1623 = vmatpush.msra.mxu0 0.0
        %1624 = vmatpush.msra.mxu0 %v1604
        %1625 = vmatmul.f32.gmra.mxu0 %v1607
        %v1626 = vpop.f32.mrf.mxu0
        %v1627 = vadd.f32 0.0, %v1626
        %1628 = vdwg.mxu0
        %1630 = vrot.lane.b32.xlu0 %v1575, 8
        %v1631 = vpop.permute.xlu0 %1630
        %1634 = vrot.lane.b32.xlu0 %v1601, 16
        %v1635 = vpop.permute.xlu0 %1634
        %1638 = vrot.lane.b32.xlu0 %v1627, 24
        %v1639 = vpop.permute.xlu0 %1638
        %v1641 = vsel %vm889, %v1549, %v1631
        %v1642 = vsel %vm744, %v1641, %v1635
        %v1643 = vsel %vm1165, %v1642, %v1639
        %s1644 = scalar_lea.vmem %s9, 32
        %v1645 = vld [vmem:[%s1644] sm:$0xff]
        %v1646 = vld [vmem:[%s1644 + $0x8] sm:$0xff]
        %v1647 = vld [vmem:[%s1644 + $0x10] sm:$0xff]
        %v1648 = vld [vmem:[%s1644 + $0x18] sm:$0xff]
        %s1649 = scalar_lea.vmem %s10, 1
        %v1650 = vld [vmem:[%s1649] sm:$0x1]
        %v1652 = vperm.slane %v1650, 0
        %v1655 = vsel %vm812, %v1643, 0
        %1657 = vmatpush.msra.mxu0 0.0
        %1658 = vmatpush.msra.mxu0 0.0
        %1659 = vmatpush.msra.mxu0 0.0
        %1660 = vmatpush.msra.mxu0 0.0
        %1661 = vmatpush.msra.mxu0 0.0
        %1662 = vmatpush.msra.mxu0 0.0
        %1663 = vmatpush.msra.mxu0 0.0
        %1664 = vmatpush.msra.mxu0 0.0
        %1665 = vmatpush.msra.mxu0 0.0
        %1666 = vmatpush.msra.mxu0 0.0
        %1667 = vmatpush.msra.mxu0 0.0
        %1668 = vmatpush.msra.mxu0 0.0
        %1669 = vmatpush.msra.mxu0 %v1648
        %1670 = vmatpush.msra.mxu0 %v1647
        %1671 = vmatpush.msra.mxu0 %v1646
        %1672 = vmatpush.msra.mxu0 %v1645
        %1673 = vmatmul.f32.gmra.mxu0 %v1655
        %v1674 = vpop.f32.mrf.mxu0
        %v1675 = vadd.f32 %v1652, %v1674
        %1676 = vdwg.mxu0
        %s1677 = scalar_lea.vmem %s11, 2
        %v1678 = vld [vmem:[%s1677] sm:$0x3]
        %v1679 = vadd.f32 %v1675, %v1328
        %v1680 = vsel %vm812, %v1679, 0.0
        %1681 = vadd.xlane.f32.xlu0 %v1680
        %v1682 = vpop.xlane.xlu0 %1681
        %v1683 = vmul.f32 %v1682, %v822
        %v1684 = vsub.f32 %v1679, %v1683
        %v1685 = vmul.f32 %v1684, %v1684
        %v1686 = vsel %vm812, %v1685, 0.0
        %1687 = vadd.xlane.f32.xlu0 %v1686
        %v1688 = vpop.xlane.xlu0 %1687
        %v1689 = vmul.f32 %v1688, %v822
        %v1690 = vadd.f32 %v1689, 1e-12
        %v1691 = vrsqrt.pop %v1690
        %v1692 = vmul.f32 %v1691, %v1690
        %v1693 = vmul.f32 %v1692, %v1691
        %v1694 = vmul.f32 0.5, %v1693
        %v1695 = vsub.f32 1.5, %v1694
        %v1696 = vmul.f32 %v1691, %v1695
        %vm1697 = vweird.f32 %v1690
        %vm1698 = vweird.f32 %v1691
        %vm1699 = vmor %vm1697, %vm1698
        %v1700 = vsel %vm1699, %v1691, %v1696
        %v1701 = vmul.f32 %v1684, %v1700
        %v1702 = vperm.slane %v1678, 0
        %v1703 = vmul.f32 %v1701, %v1702
        %v1704 = vperm.slane %v1678, 1
        %v1705 = vadd.f32 %v1703, %v1704
        %s1706 = scalar_lea.vmem %s12, 32
        %v1707 = vld [vmem:[%s1706] sm:$0xff]
        %v1708 = vld [vmem:[%s1706 + $0x8] sm:$0xff]
        %v1709 = vld [vmem:[%s1706 + $0x10] sm:$0xff]
        %v1710 = vld [vmem:[%s1706 + $0x18] sm:$0xff]
        %s1711 = scalar_lea.vmem %s13, 1
        %v1712 = vld [vmem:[%s1711] sm:$0x1]
        %v1714 = vperm.slane %v1712, 0
        %v1717 = vsel %vm812, %v1705, 0
        %1719 = vmatpush.msra.mxu0 0.0
        %1720 = vmatpush.msra.mxu0 0.0
        %1721 = vmatpush.msra.mxu0 0.0
        %1722 = vmatpush.msra.mxu0 0.0
        %1723 = vmatpush.msra.mxu0 0.0
        %1724 = vmatpush.msra.mxu0 0.0
        %1725 = vmatpush.msra.mxu0 0.0
        %1726 = vmatpush.msra.mxu0 0.0
        %1727 = vmatpush.msra.mxu0 0.0
        %1728 = vmatpush.msra.mxu0 0.0
        %1729 = vmatpush.msra.mxu0 0.0
        %1730 = vmatpush.msra.mxu0 0.0
        %1731 = vmatpush.msra.mxu0 %v1710
        %1732 = vmatpush.msra.mxu0 %v1709
        %1733 = vmatpush.msra.mxu0 %v1708
        %1734 = vmatpush.msra.mxu0 %v1707
        %1735 = vmatmul.f32.gmra.mxu0 %v1717
        %v1736 = vpop.f32.mrf.mxu0
        %v1737 = vadd.f32 %v1714, %v1736
        %1738 = vdwg.mxu0
        %v1739 = vmul.f32 %v1737, %v1737
        %v1740 = vmul.f32 %v1737, %v1739
        %v1741 = vmul.f32 %v1740, 0.044715
        %v1742 = vadd.f32 %v1737, %v1741
        %v1743 = vmul.f32 %v1742, 0.7978846
        %v1744 = vtanh.pop %v1743
        %v1745 = vadd.f32 %v1744, 1.0
        %v1746 = vmul.f32 %v1745, 0.5
        %v1747 = vmul.f32 %v1737, %v1746
        %s1748 = scalar_lea.vmem %s14, 64
        %v1749 = vld [vmem:[%s1748] sm:$0xff]
        %v1750 = vld [vmem:[%s1748 + $0x8] sm:$0xff]
        %v1751 = vld [vmem:[%s1748 + $0x10] sm:$0xff]
        %v1752 = vld [vmem:[%s1748 + $0x18] sm:$0xff]
        %v1753 = vld [vmem:[%s1748 + $0x20] sm:$0xff]
        %v1754 = vld [vmem:[%s1748 + $0x28] sm:$0xff]
        %v1755 = vld [vmem:[%s1748 + $0x30] sm:$0xff]
        %v1756 = vld [vmem:[%s1748 + $0x38] sm:$0xff]
        %s1757 = scalar_lea.vmem %s15, 1
        %v1758 = vld [vmem:[%s1757] sm:$0x1]
        %v1760 = vperm.slane %v1758, 0
        %v1763 = vsel %vm768, %v1747, 0
        %1765 = vmatpush.msra.mxu0 0.0
        %1766 = vmatpush.msra.mxu0 0.0
        %1767 = vmatpush.msra.mxu0 0.0
        %1768 = vmatpush.msra.mxu0 0.0
        %1769 = vmatpush.msra.mxu0 0.0
        %1770 = vmatpush.msra.mxu0 0.0
        %1771 = vmatpush.msra.mxu0 0.0
        %1772 = vmatpush.msra.mxu0 0.0
        %1773 = vmatpush.msra.mxu0 %v1756
        %1774 = vmatpush.msra.mxu0 %v1755
        %1775 = vmatpush.msra.mxu0 %v1754
        %1776 = vmatpush.msra.mxu0 %v1753
        %1777 = vmatpush.msra.mxu0 %v1752
        %1778 = vmatpush.msra.mxu0 %v1751
        %1779 = vmatpush.msra.mxu0 %v1750
        %1780 = vmatpush.msra.mxu0 %v1749
        %1781 = vmatmul.f32.gmra.mxu0 %v1763
        %v1782 = vpop.f32.mrf.mxu0
        %v1783 = vadd.f32 %v1760, %v1782
        %1784 = vdwg.mxu0
        %s1785 = scalar_lea.vmem %s16, 2
        %v1786 = vld [vmem:[%s1785] sm:$0x3]
        %v1787 = vadd.f32 %v1783, %v1705
        %v1788 = vsel %vm812, %v1787, 0.0
        %1789 = vadd.xlane.f32.xlu0 %v1788
        %v1790 = vpop.xlane.xlu0 %1789
        %v1791 = vmul.f32 %v1790, %v822
        %v1792 = vsub.f32 %v1787, %v1791
        %v1793 = vmul.f32 %v1792, %v1792
        %v1794 = vsel %vm812, %v1793, 0.0
        %1795 = vadd.xlane.f32.xlu0 %v1794
        %v1796 = vpop.xlane.xlu0 %1795
        %v1797 = vmul.f32 %v1796, %v822
        %v1798 = vadd.f32 %v1797, 1e-12
        %v1799 = vrsqrt.pop %v1798
        %v1800 = vmul.f32 %v1799, %v1798
        %v1801 = vmul.f32 %v1800, %v1799
        %v1802 = vmul.f32 0.5, %v1801
        %v1803 = vsub.f32 1.5, %v1802
        %v1804 = vmul.f32 %v1799, %v1803
        %vm1805 = vweird.f32 %v1798
        %vm1806 = vweird.f32 %v1799
        %vm1807 = vmor %vm1805, %vm1806
        %v1808 = vsel %vm1807, %v1799, %v1804
        %v1809 = vmul.f32 %v1792, %v1808
        %v1810 = vperm.slane %v1786, 0
        %v1811 = vmul.f32 %v1809, %v1810
        %v1812 = vperm.slane %v1786, 1
        %v1813 = vadd.f32 %v1811, %v1812
        %v1814 = vld [vmem:[%s17] sm:$0xff]
        %v1815 = vld [vmem:[%s17 + $0x8] sm:$0xff]
        %v1816 = vld [vmem:[%s17 + $0x10] sm:$0xff]
        %v1817 = vld [vmem:[%s17 + $0x18] sm:$0xff]
        %v1818 = vld [vmem:[%s18] sm:$0x1]
        %v1820 = vperm.slane %v1818, 0
        %v1823 = vsel %vm812, %v1813, 0
        %1825 = vmatpush.msra.mxu0 0.0
        %1826 = vmatpush.msra.mxu0 0.0
        %1827 = vmatpush.msra.mxu0 0.0
        %1828 = vmatpush.msra.mxu0 0.0
        %1829 = vmatpush.msra.mxu0 0.0
        %1830 = vmatpush.msra.mxu0 0.0
        %1831 = vmatpush.msra.mxu0 0.0
        %1832 = vmatpush.msra.mxu0 0.0
        %1833 = vmatpush.msra.mxu0 0.0
        %1834 = vmatpush.msra.mxu0 0.0
        %1835 = vmatpush.msra.mxu0 0.0
        %1836 = vmatpush.msra.mxu0 0.0
        %1837 = vmatpush.msra.mxu0 %v1817
        %1838 = vmatpush.msra.mxu0 %v1816
        %1839 = vmatpush.msra.mxu0 %v1815
        %1840 = vmatpush.msra.mxu0 %v1814
        %1841 = vmatmul.f32.gmra.mxu0 %v1823
        %v1842 = vpop.f32.mrf.mxu0
        %v1843 = vadd.f32 %v1820, %v1842
        %1844 = vdwg.mxu0
        %vm1845 = vcmask 31744
        %1846 = vst.msk [vmem:[%s719] sm:$0xff] %vm1845, %v1843
        %v1847 = vld [vmem:[%s19] sm:$0xff]
        %v1848 = vld [vmem:[%s19 + $0x8] sm:$0xff]
        %v1849 = vld [vmem:[%s19 + $0x10] sm:$0xff]
        %v1850 = vld [vmem:[%s19 + $0x18] sm:$0xff]
        %v1851 = vld [vmem:[%s20] sm:$0x1]
        %1852 = vmatpush.msra.mxu0 0.0
        %1853 = vmatpush.msra.mxu0 0.0
        %1854 = vmatpush.msra.mxu0 0.0
        %1855 = vmatpush.msra.mxu0 0.0
        %1856 = vmatpush.msra.mxu0 0.0
        %1857 = vmatpush.msra.mxu0 0.0
        %1858 = vmatpush.msra.mxu0 0.0
        %1859 = vmatpush.msra.mxu0 0.0
        %1860 = vmatpush.msra.mxu0 0.0
        %1861 = vmatpush.msra.mxu0 0.0
        %1862 = vmatpush.msra.mxu0 0.0
        %1863 = vmatpush.msra.mxu0 0.0
        %1864 = vmatpush.msra.mxu0 %v1850
        %1865 = vmatpush.msra.mxu0 %v1849
        %1866 = vmatpush.msra.mxu0 %v1848
        %1867 = vmatpush.msra.mxu0 %v1847
        %1868 = vmatmul.f32.gmra.mxu0 %v1823
        %v1869 = vpop.f32.mrf.mxu0
        %v1870 = vadd.f32 %v1851, %v1869
        %1871 = vdwg.mxu0
        %vm1872 = vcmask 16384
        %1873 = vst.msk [vmem:[%s704] sm:$0x1] %vm1872, %v1870
        %p1874 = scmp.lt.s32.totalorder %s37, 1
        %s1875 = scalar_select %p1874, %s37, 1
        %s1876 = smul.addr %s1875, 8
        %s1877 = scalar_lea.vmem %s21, %s1876
        %s1878 = sand.u32 %s527, 1
        %s1879 = scalar_lea.sflag [#allocation3], %s1878
        %s1880 = sand.u32 %s527, 1
        %s1881 = scalar_lea.vmem [#allocation2], %s1880
        // Predicated region
        $region105: #{run.1} parent=103 // pred_check
          %p1882 = pneg %p511
        $region106: #{run.1} parent=103 // pred_check_branch
          %1884 = sbr.rel (%p1882) target = $region108
        $region107: #{run.1} parent=103 // pred_region
          _
        $region108: #{run.1} parent=103 // pred_fallthru
          _
        // Predicated region
        $region109: #{run.1} parent=103 // pred_check
          %p1885 = pneg %p537
        $region110: #{run.1} parent=103 // pred_check_branch
          %1887 = sbr.rel (%p1885) target = $region112
        $region111: #{run.1} parent=103 // pred_region
          %1889 = vsyncadd %s1879, 0
          %s1890 = scalar_lea.hbm %s22, %s37
          %s1892 = sshll.u32 %s1881, 4
          %s1893 = int_to_ptr.vmem [resolvable:$true] %s1892
          %s1894 = sshll.u32 %s1890, 4
          %s1895 = int_to_ptr.hbm [resolvable:$true] %s1894
          %1897 = dma.vmem_to_hbm [thread:$0]  %s1893, 16, %s1895, %s1879
        $region112: #{run.1} parent=103 // pred_fallthru
          _
      $region104: #{run.1} parent=5 // pred_fallthru
        _
      %p1898 = scmp.le.s32.totalorder 2, %s32
      // Predicated region
      $region113: #{run.1} parent=5 // pred_check
        %p1899 = pneg %p1898
      $region114: #{run.1} parent=5 // pred_check_branch
        %1901 = sbr.rel (%p1899) target = $region116
      $region115: #{run.1} parent=5 // pred_region
        %s1902 = ssub.s32 %s32, 2
        // Predicated region
        $region117: #{run.1} parent=115 // pred_check
          %p1903 = pneg %p517
        $region118: #{run.1} parent=115 // pred_check_branch
          %1905 = sbr.rel (%p1903) target = $region120
        $region119: #{run.1} parent=115 // pred_region
          %p1906 = scmp.lt.s32.totalorder %s38, 1
          %s1907 = scalar_select %p1906, %s38, 1
          %s1908 = smul.addr %s1907, 8
          %s1909 = scalar_lea.vmem %s21, %s1908
        $region120: #{run.1} parent=115 // pred_fallthru
          _
        // Predicated region
        $region121: #{run.1} parent=115 // pred_check
          %p1910 = pneg %p543
        $region122: #{run.1} parent=115 // pred_check_branch
          %1912 = sbr.rel (%p1910) target = $region124
        $region123: #{run.1} parent=115 // pred_region
          %s1913 = sand.u32 %s528, 1
          %s1914 = scalar_lea.sflag [#allocation3], %s1913
          %s1915 = sand.u32 %s528, 1
          %s1916 = scalar_lea.vmem [#allocation2], %s1915
          %1918 = dma.done %s1914, 16
        $region124: #{run.1} parent=115 // pred_fallthru
          _
      $region116: #{run.1} parent=5 // pred_fallthru
        _
    $region6: #{run.1} parent=1 // loop_footer
      %s36 = sadd.s32 1, %s32
    $region7: #{run.1} parent=1 // loop_footer_branch
      %31 = sbr.rel target = $region3
    $region8: #{run.1} parent=1 // loop_exit
      _
    %1919 = vsyncpa [#allocation3], 1
    %s1920 = scalar_lea.sflag [#allocation3], 1
    %1921 = vsyncpa %s1920, 1

</llo_original>
